<compile_context>
chip_gen: v6e
topology: v6e:2x2x1
jax: 0.10.0
libtpu: 0.0.40
codegen_flags: <defaults>
</compile_context>

<pallas_src>
import numpy as np
import jax
import jax.numpy as jnp
from jax.experimental import pallas as pl
from jax.experimental.pallas import tpu as pltpu

# ---- problem config (matches the PyTorch module defaults) ----
B, C, H, W = 2, 4, 16, 16        # batch / NCHW pixel_values
E = 4                            # n_models (number of experts)
GATE_HIDDEN = 16                 # gating hidden_dim
TOP_K = 2
Q = 8                            # num detection queries
NC = 6                           # num classes; logits[..., 0] drives the gate
D = C * H * W                    # flattened pixel dim (1024)
O = Q * (NC + 4)                 # per-expert head width: logits + boxes (80)

# ---- TPU-friendly padded sizes ----
TILE_B = 8                       # batch tile = one full sublane group
OP = 128                         # per-expert head width padded to a lane group
NTOT = E * OP                    # packed head width (512, multiple of 128)
NUM_TILES = (B + TILE_B - 1) // TILE_B
PAD_ROWS = NUM_TILES * TILE_B

# slab lane layout: [0:80) comb | [80:84) nw | [84:88) probs | [88] fp | [89:91) ti
_NW0 = O
_PR0 = O + E
_FP0 = O + 2 * E
_TI0 = O + 2 * E + 1
_PAD_LANES = OP - (_TI0 + TOP_K)   # 37


# --------------------------------------------------------------------------
# Fused kernel: expert heads -> expert_probs -> gate MLP -> top-2 -> combine
# --------------------------------------------------------------------------
def _fused_moe_kernel(x_ref, w_ref, b_ref, s_ref, gw1_ref, gb1_ref,
                      gw2t_ref, gb2_ref, out_ref):
    # 1) All expert heads in ONE MXU pass: (8,D)bf16 @ (D,E*OP)bf16 -> f32.
    head = jnp.dot(x_ref[...], w_ref[...],
                   preferred_element_type=jnp.float32) + b_ref[...]     # (8, NTOT)

    # 2) expert_probs[b,e] = sigmoid(mean_q logits_e[b,q,0]) — VPU masked
    #    lane-reduce per expert (mask already holds the 1/Q factor).  Exact f32,
    #    no MXU round trip for a tiny dot.
    cls = [jnp.sum(head * s_ref[e:e + 1, :], axis=-1, keepdims=True)
           for e in range(E)]
    probs = jax.nn.sigmoid(jnp.concatenate(cls, axis=-1))               # (8, E)

    # 3) gating MLP (Linear -> ReLU -> Linear -> Softmax) fully on the VPU:
    #    E=4 broadcast FMAs for the first layer, E masked lane-reduces for the
    #    second (gate_w2 pre-transposed host-side).
    gw1 = gw1_ref[...]                                                  # (E, GH)
    hid = gb1_ref[...] + probs[:, 0:1] * gw1[0:1, :]
    for e in range(1, E):
        hid = hid + probs[:, e:e + 1] * gw1[e:e + 1, :]
    hid = jnp.maximum(hid, 0.0)                                         # (8, GH)
    gcols = [jnp.sum(hid * gw2t_ref[e:e + 1, :], axis=-1, keepdims=True)
             for e in range(E)]
    g = jnp.concatenate(gcols, axis=-1) + gb2_ref[...]                  # (8, E)
    g = g - jnp.max(g, axis=-1, keepdims=True)
    eg = jnp.exp(g)
    wfull = eg / jnp.sum(eg, axis=-1, keepdims=True)                    # (8, E)

    # 4) top-2 selection (argmax, then masked argmax); lowest-index tie-break
    #    matches lax.top_k.
    iota_e = jax.lax.broadcasted_iota(jnp.int32, (TILE_B, E), 1)
    m1 = jnp.max(wfull, axis=-1, keepdims=True)
    idx1 = jnp.min(jnp.where(wfull == m1, iota_e, E), axis=-1, keepdims=True)
    w_m1 = jnp.where(iota_e == idx1, -jnp.inf, wfull)
    m2 = jnp.max(w_m1, axis=-1, keepdims=True)
    idx2 = jnp.min(jnp.where(w_m1 == m2, iota_e, E), axis=-1, keepdims=True)
    sel = jnp.logical_or(iota_e == idx1, iota_e == idx2).astype(jnp.float32)
    mw = wfull * sel
    nw = mw / (jnp.sum(mw, axis=-1, keepdims=True) + 1e-8)              # (8, E)

    # 5) weighted combination of the expert heads: E lane-block-aligned static
    #    slices + FMAs on the resident head.
    comb = nw[:, 0:1] * head[:, 0:OP]
    for e in range(1, E):
        comb = comb + nw[:, e:e + 1] * head[:, e * OP:(e + 1) * OP]     # (8, OP)

    # 6) single unmasked lane-dense (8,128) output slab: comb | nw | probs | fp | ti.
    fp = jnp.sum(nw * probs, axis=-1, keepdims=True)                    # (8, 1)
    ti_f = jnp.concatenate([idx1, idx2], axis=-1).astype(jnp.float32)   # (8, 2)
    pad = jnp.zeros((TILE_B, _PAD_LANES), jnp.float32)
    out_ref[...] = jnp.concatenate([comb[:, :O], nw, probs, fp, ti_f, pad],
                                   axis=-1)


def _run_fused(x_pad, pp):
    const = lambda i: (0, 0)          # frozen weights: VMEM-resident across tiles
    return pl.pallas_call(
        _fused_moe_kernel,
        out_shape=jax.ShapeDtypeStruct((PAD_ROWS, OP), jnp.float32),
        grid=(NUM_TILES,),
        in_specs=[
            pl.BlockSpec((TILE_B, D), lambda i: (i, 0)),        # x batch tile
            pl.BlockSpec((D, NTOT), const),                     # packed expert W
            pl.BlockSpec((1, NTOT), const),                     # packed expert b
            pl.BlockSpec((E, NTOT), const),                     # cls-0 mean masks
            pl.BlockSpec((E, GATE_HIDDEN), const),              # gate_w1
            pl.BlockSpec((1, GATE_HIDDEN), const),              # gate_b1
            pl.BlockSpec((E, GATE_HIDDEN), const),              # gate_w2^T
            pl.BlockSpec((1, E), const),                        # gate_b2
        ],
        out_specs=pl.BlockSpec((TILE_B, OP), lambda i: (i, 0)),
        compiler_params=pltpu.CompilerParams(
            dimension_semantics=("parallel",)),
    )(x_pad, pp["w_pack"], pp["b_pack"], pp["cls0_mask"],
      pp["gate_w1"], pp["gate_b1"], pp["gate_w2_t"], pp["gate_b2"])


# --------------------------------------------------------------------------
# One-time (frozen expert) weight packing, done outside the forward pass.
# --------------------------------------------------------------------------
def prepare_params(params):
    wE = np.asarray(params["expert_w"], np.float32)          # (E, D, O)
    bE = np.asarray(params["expert_b"], np.float32)          # (E, 1, O)
    w_pack = np.zeros((D, NTOT), np.float32)
    b_pack = np.zeros((1, NTOT), np.float32)
    for e in range(E):
        w_pack[:, e * OP:e * OP + O] = wE[e]
        b_pack[:, e * OP:e * OP + O] = bE[e]
    # per-expert masks selecting & averaging the class-0 logit lanes
    cls0_mask = np.zeros((E, NTOT), np.float32)
    for e in range(E):
        for q in range(Q):
            cls0_mask[e, e * OP + q * (NC + 4)] = 1.0 / Q
    return {
        "w_pack": jnp.asarray(w_pack, jnp.bfloat16),   # bf16 weights, f32 accum
        "b_pack": jnp.asarray(b_pack),
        "cls0_mask": jnp.asarray(cls0_mask),
        "gate_w1": params["gate_w1"],
        "gate_b1": params["gate_b1"],
        "gate_w2_t": jnp.transpose(params["gate_w2"]),          # (E, GATE_HIDDEN)
        "gate_b2": params["gate_b2"],
    }


# --------------------------------------------------------------------------
# Wrapper mirroring IntegratedMoE.forward
# --------------------------------------------------------------------------
@jax.jit
def integrated_moe_forward(pixel_values, prepared):
    x = pixel_values.reshape(B, -1).astype(jnp.bfloat16)              # NCHW flatten
    x_pad = jnp.zeros((PAD_ROWS, D), jnp.bfloat16).at[:B].set(x)      # pad batch -> 8
    slab = _run_fused(x_pad, prepared)                                # (PAD_ROWS, 128)

    head = slab[:B, :O].reshape(B, Q, NC + 4)
    nw = slab[:B, _NW0:_NW0 + E]
    probs = slab[:B, _PR0:_PR0 + E]
    fp = slab[:B, _FP0]
    ti = slab[:B, _TI0:_TI0 + TOP_K].astype(jnp.int32)

    combined_outputs = {                # stands in for YolosObjectDetectionOutput
        "loss": jnp.float32(0.0),
        "logits": head[..., :NC],
        "pred_boxes": head[..., NC:],
        "last_hidden_state": None,
    }
    return combined_outputs, fp, nw, probs, ti


# --------------------------------------------------------------------------
# Pure-JAX reference (bf16 expert weights, f32 accumulate -- same numerics)
# --------------------------------------------------------------------------
def reference_forward(pixel_values, params):
    x = pixel_values.reshape(B, -1).astype(jnp.bfloat16)
    wE = params["expert_w"].astype(jnp.bfloat16)
    head = jnp.einsum("bd,edo->ebo", x, wE,
                      preferred_element_type=jnp.float32) + params["expert_b"]
    head = head.reshape(E, B, Q, NC + 4)
    elog, ebox = head[..., :NC], head[..., NC:]
    probs = jax.nn.sigmoid(jnp.mean(elog[..., 0], axis=-1)).T            # (B, E)
    h = jnp.maximum(jnp.dot(probs, params["gate_w1"], precision="highest")
                    + params["gate_b1"], 0.0)
    g = jnp.dot(h, params["gate_w2"], precision="highest") + params["gate_b2"]
    wfull = jax.nn.softmax(g, axis=-1)
    _, top_idx = jax.lax.top_k(wfull, TOP_K)
    mask = jnp.zeros_like(wfull).at[jnp.arange(B)[:, None], top_idx].set(1.0)
    mw = wfull * mask
    nw = mw / (mw.sum(-1, keepdims=True) + 1e-8)
    cl = jnp.einsum("be,ebqc->bqc", nw, elog, precision="highest")
    cb = jnp.einsum("be,ebqk->bqk", nw, ebox, precision="highest")
    fp = jnp.sum(nw * probs, axis=-1)
    return cl, cb, fp, nw, probs, top_idx


if __name__ == "__main__":
    key = jax.random.PRNGKey(0)
    k0, k1, k2, k3, k4 = jax.random.split(key, 5)

    pixel_values = jax.random.normal(k0, (B, C, H, W), jnp.float32)
    params = {
        # frozen synthetic expert detection heads (stand-ins for YOLOS experts)
        "expert_w": jax.random.normal(k1, (E, D, O), jnp.float32) / np.sqrt(D),
        "expert_b": jax.random.normal(k2, (E, 1, O), jnp.float32) * 0.01,
        # trainable gating network (Linear(E,H) -> ReLU -> Linear(H,E) -> Softmax)
        "gate_w1": jax.random.normal(k3, (E, GATE_HIDDEN), jnp.float32) / np.sqrt(E),
        "gate_b1": jnp.zeros((1, GATE_HIDDEN), jnp.float32),
        "gate_w2": jax.random.normal(k4, (GATE_HIDDEN, E), jnp.float32) / np.sqrt(GATE_HIDDEN),
        "gate_b2": jnp.zeros((1, E), jnp.float32),
    }
    prepared = prepare_params(params)

    combined, final_pred, weights, expert_probs, top_indices = \
        integrated_moe_forward(pixel_values, prepared)
    jax.block_until_ready((combined["logits"], combined["pred_boxes"],
                           final_pred, weights, expert_probs, top_indices))

    # correctness check vs pure-JAX reference
    rcl, rcb, rfp, rnw, rpr, rti = reference_forward(pixel_values, params)
    assert combined["pred_boxes"].shape[-1] == 4
    np.testing.assert_allclose(np.asarray(combined["logits"]), np.asarray(rcl),
                               rtol=1e-2, atol=1e-2)
    np.testing.assert_allclose(np.asarray(combined["pred_boxes"]), np.asarray(rcb),
                               rtol=1e-2, atol=1e-2)
    np.testing.assert_allclose(np.asarray(final_pred), np.asarray(rfp),
                               rtol=1e-2, atol=1e-2)
    np.testing.assert_allclose(np.asarray(weights), np.asarray(rnw),
                               rtol=1e-2, atol=1e-2)
    np.testing.assert_allclose(np.asarray(expert_probs), np.asarray(rpr),
                               rtol=1e-2, atol=1e-2)
    assert np.array_equal(np.asarray(top_indices), np.asarray(rti))

    print("KERNEL_OK")
</pallas_src>

<mosaic_0001>
module attributes {stable_mosaic.version = 11 : i64} {
  func.func @_fused_moe_kernel(%arg0: i32, %arg1: memref<8x1024xbf16, #tpu.memory_space<vmem>>, %arg2: memref<1024x512xbf16, #tpu.memory_space<vmem>>, %arg3: memref<1x512xf32, #tpu.memory_space<vmem>>, %arg4: memref<4x512xf32, #tpu.memory_space<vmem>>, %arg5: memref<4x16xf32, #tpu.memory_space<vmem>>, %arg6: memref<1x16xf32, #tpu.memory_space<vmem>>, %arg7: memref<4x16xf32, #tpu.memory_space<vmem>>, %arg8: memref<1x4xf32, #tpu.memory_space<vmem>>, %arg9: memref<8x128xf32, #tpu.memory_space<vmem>>) attributes {dimension_semantics = [#tpu.dimension_semantics<parallel>], iteration_bounds = array<i64: 1>, scalar_prefetch = 0 : i64, scratch_operands = 0 : i64, tpu.core_type = #tpu.core_type<tc>, window_params = [{transform_indices = @transform_0, window_bounds = array<i64: 8, 1024>}, {pipeline_mode = #tpu.pipeline_mode<synchronous>, transform_indices = @transform_1, window_bounds = array<i64: 1024, 512>}, {pipeline_mode = #tpu.pipeline_mode<synchronous>, transform_indices = @transform_2, window_bounds = array<i64: 1, 512>}, {pipeline_mode = #tpu.pipeline_mode<synchronous>, transform_indices = @transform_3, window_bounds = array<i64: 4, 512>}, {pipeline_mode = #tpu.pipeline_mode<synchronous>, transform_indices = @transform_4, window_bounds = array<i64: 4, 16>}, {pipeline_mode = #tpu.pipeline_mode<synchronous>, transform_indices = @transform_5, window_bounds = array<i64: 1, 16>}, {pipeline_mode = #tpu.pipeline_mode<synchronous>, transform_indices = @transform_6, window_bounds = array<i64: 4, 16>}, {pipeline_mode = #tpu.pipeline_mode<synchronous>, transform_indices = @transform_7, window_bounds = array<i64: 1, 4>}, {transform_indices = @transform_8, window_bounds = array<i64: 8, 128>}]} {
    %c0 = arith.constant 0 : index
    %c0_0 = arith.constant 0 : index
    %0 = vector.load %arg1[%c0, %c0_0] : memref<8x1024xbf16, #tpu.memory_space<vmem>>, vector<8x1024xbf16>
    %c0_1 = arith.constant 0 : index
    %c0_2 = arith.constant 0 : index
    %1 = vector.load %arg2[%c0_1, %c0_2] : memref<1024x512xbf16, #tpu.memory_space<vmem>>, vector<1024x512xbf16>
    %cst = arith.constant dense<0.000000e+00> : vector<8x512xf32>
    %2 = tpu.matmul %0, %1, %cst {dimension_numbers = #tpu.dot_dimension_numbers<[1], [0], [0], [1], [0, 0, 1, 1], [], []>} : vector<8x1024xbf16>, vector<1024x512xbf16>, vector<8x512xf32> -> vector<8x512xf32>
    %c0_3 = arith.constant 0 : index
    %c0_4 = arith.constant 0 : index
    %3 = vector.load %arg3[%c0_3, %c0_4] : memref<1x512xf32, #tpu.memory_space<vmem>>, vector<1x512xf32>
    %4 = vector.broadcast %3 : vector<1x512xf32> to vector<8x512xf32>
    %5 = arith.addf %2, %4 : vector<8x512xf32>
    %c0_5 = arith.constant 0 : index
    %c0_6 = arith.constant 0 : index
    %6 = vector.load %arg4[%c0_5, %c0_6] : memref<4x512xf32, #tpu.memory_space<vmem>>, vector<1x512xf32>
    %7 = vector.broadcast %6 : vector<1x512xf32> to vector<8x512xf32>
    %8 = arith.mulf %5, %7 : vector<8x512xf32>
    %cst_7 = arith.constant dense<0.000000e+00> : vector<8xf32>
    %9 = vector.multi_reduction <add>, %8, %cst_7 [1] : vector<8x512xf32> to vector<8xf32>
    %10 = vector.shape_cast %9 : vector<8xf32> to vector<8x1xf32>
    %c1 = arith.constant 1 : index
    %c0_8 = arith.constant 0 : index
    %11 = vector.load %arg4[%c1, %c0_8] : memref<4x512xf32, #tpu.memory_space<vmem>>, vector<1x512xf32>
    %12 = vector.broadcast %11 : vector<1x512xf32> to vector<8x512xf32>
    %13 = arith.mulf %5, %12 : vector<8x512xf32>
    %cst_9 = arith.constant dense<0.000000e+00> : vector<8xf32>
    %14 = vector.multi_reduction <add>, %13, %cst_9 [1] : vector<8x512xf32> to vector<8xf32>
    %15 = vector.shape_cast %14 : vector<8xf32> to vector<8x1xf32>
    %c2 = arith.constant 2 : index
    %c0_10 = arith.constant 0 : index
    %16 = vector.load %arg4[%c2, %c0_10] : memref<4x512xf32, #tpu.memory_space<vmem>>, vector<1x512xf32>
    %17 = vector.broadcast %16 : vector<1x512xf32> to vector<8x512xf32>
    %18 = arith.mulf %5, %17 : vector<8x512xf32>
    %cst_11 = arith.constant dense<0.000000e+00> : vector<8xf32>
    %19 = vector.multi_reduction <add>, %18, %cst_11 [1] : vector<8x512xf32> to vector<8xf32>
    %20 = vector.shape_cast %19 : vector<8xf32> to vector<8x1xf32>
    %c3 = arith.constant 3 : index
    %c0_12 = arith.constant 0 : index
    %21 = vector.load %arg4[%c3, %c0_12] : memref<4x512xf32, #tpu.memory_space<vmem>>, vector<1x512xf32>
    %22 = vector.broadcast %21 : vector<1x512xf32> to vector<8x512xf32>
    %23 = arith.mulf %5, %22 : vector<8x512xf32>
    %cst_13 = arith.constant dense<0.000000e+00> : vector<8xf32>
    %24 = vector.multi_reduction <add>, %23, %cst_13 [1] : vector<8x512xf32> to vector<8xf32>
    %25 = vector.shape_cast %24 : vector<8xf32> to vector<8x1xf32>
    %26 = tpu.concatenate %10, %15, %20, %25 in 1 : vector<8x1xf32>, vector<8x1xf32>, vector<8x1xf32>, vector<8x1xf32> -> vector<8x4xf32>
    %27 = arith.negf %26 : vector<8x4xf32>
    %28 = math.exp %27 : vector<8x4xf32>
    %cst_14 = arith.constant 1.000000e+00 : f32
    %29 = vector.broadcast %cst_14 : f32 to vector<8x4xf32>
    %30 = arith.addf %29, %28 : vector<8x4xf32>
    %31 = arith.divf %29, %30 : vector<8x4xf32>
    %c0_15 = arith.constant 0 : index
    %c0_16 = arith.constant 0 : index
    %32 = vector.load %arg5[%c0_15, %c0_16] : memref<4x16xf32, #tpu.memory_space<vmem>>, vector<4x16xf32>
    %c0_17 = arith.constant 0 : index
    %c0_18 = arith.constant 0 : index
    %33 = vector.load %arg6[%c0_17, %c0_18] : memref<1x16xf32, #tpu.memory_space<vmem>>, vector<1x16xf32>
    %34 = vector.extract_strided_slice %31 {offsets = [0, 0], sizes = [8, 1], strides = [1, 1]} : vector<8x4xf32> to vector<8x1xf32>
    %35 = vector.extract_strided_slice %32 {offsets = [0, 0], sizes = [1, 16], strides = [1, 1]} : vector<4x16xf32> to vector<1x16xf32>
    %36 = vector.broadcast %34 : vector<8x1xf32> to vector<8x16xf32>
    %37 = vector.broadcast %35 : vector<1x16xf32> to vector<8x16xf32>
    %38 = arith.mulf %36, %37 : vector<8x16xf32>
    %39 = vector.broadcast %33 : vector<1x16xf32> to vector<8x16xf32>
    %40 = arith.addf %39, %38 : vector<8x16xf32>
    %41 = vector.extract_strided_slice %31 {offsets = [0, 1], sizes = [8, 1], strides = [1, 1]} : vector<8x4xf32> to vector<8x1xf32>
    %42 = vector.extract_strided_slice %32 {offsets = [1, 0], sizes = [1, 16], strides = [1, 1]} : vector<4x16xf32> to vector<1x16xf32>
    %43 = vector.broadcast %41 : vector<8x1xf32> to vector<8x16xf32>
    %44 = vector.broadcast %42 : vector<1x16xf32> to vector<8x16xf32>
    %45 = arith.mulf %43, %44 : vector<8x16xf32>
    %46 = arith.addf %40, %45 : vector<8x16xf32>
    %47 = vector.extract_strided_slice %31 {offsets = [0, 2], sizes = [8, 1], strides = [1, 1]} : vector<8x4xf32> to vector<8x1xf32>
    %48 = vector.extract_strided_slice %32 {offsets = [2, 0], sizes = [1, 16], strides = [1, 1]} : vector<4x16xf32> to vector<1x16xf32>
    %49 = vector.broadcast %47 : vector<8x1xf32> to vector<8x16xf32>
    %50 = vector.broadcast %48 : vector<1x16xf32> to vector<8x16xf32>
    %51 = arith.mulf %49, %50 : vector<8x16xf32>
    %52 = arith.addf %46, %51 : vector<8x16xf32>
    %53 = vector.extract_strided_slice %31 {offsets = [0, 3], sizes = [8, 1], strides = [1, 1]} : vector<8x4xf32> to vector<8x1xf32>
    %54 = vector.extract_strided_slice %32 {offsets = [3, 0], sizes = [1, 16], strides = [1, 1]} : vector<4x16xf32> to vector<1x16xf32>
    %55 = vector.broadcast %53 : vector<8x1xf32> to vector<8x16xf32>
    %56 = vector.broadcast %54 : vector<1x16xf32> to vector<8x16xf32>
    %57 = arith.mulf %55, %56 : vector<8x16xf32>
    %58 = arith.addf %52, %57 : vector<8x16xf32>
    %cst_19 = arith.constant 0.000000e+00 : f32
    %59 = vector.broadcast %cst_19 : f32 to vector<8x16xf32>
    %60 = arith.maximumf %58, %59 : vector<8x16xf32>
    %c0_20 = arith.constant 0 : index
    %c0_21 = arith.constant 0 : index
    %61 = vector.load %arg7[%c0_20, %c0_21] : memref<4x16xf32, #tpu.memory_space<vmem>>, vector<1x16xf32>
    %62 = vector.broadcast %61 : vector<1x16xf32> to vector<8x16xf32>
    %63 = arith.mulf %60, %62 : vector<8x16xf32>
    %cst_22 = arith.constant dense<0.000000e+00> : vector<8xf32>
    %64 = vector.multi_reduction <add>, %63, %cst_22 [1] : vector<8x16xf32> to vector<8xf32>
    %65 = vector.shape_cast %64 : vector<8xf32> to vector<8x1xf32>
    %c1_23 = arith.constant 1 : index
    %c0_24 = arith.constant 0 : index
    %66 = vector.load %arg7[%c1_23, %c0_24] : memref<4x16xf32, #tpu.memory_space<vmem>>, vector<1x16xf32>
    %67 = vector.broadcast %66 : vector<1x16xf32> to vector<8x16xf32>
    %68 = arith.mulf %60, %67 : vector<8x16xf32>
    %cst_25 = arith.constant dense<0.000000e+00> : vector<8xf32>
    %69 = vector.multi_reduction <add>, %68, %cst_25 [1] : vector<8x16xf32> to vector<8xf32>
    %70 = vector.shape_cast %69 : vector<8xf32> to vector<8x1xf32>
    %c2_26 = arith.constant 2 : index
    %c0_27 = arith.constant 0 : index
    %71 = vector.load %arg7[%c2_26, %c0_27] : memref<4x16xf32, #tpu.memory_space<vmem>>, vector<1x16xf32>
    %72 = vector.broadcast %71 : vector<1x16xf32> to vector<8x16xf32>
    %73 = arith.mulf %60, %72 : vector<8x16xf32>
    %cst_28 = arith.constant dense<0.000000e+00> : vector<8xf32>
    %74 = vector.multi_reduction <add>, %73, %cst_28 [1] : vector<8x16xf32> to vector<8xf32>
    %75 = vector.shape_cast %74 : vector<8xf32> to vector<8x1xf32>
    %c3_29 = arith.constant 3 : index
    %c0_30 = arith.constant 0 : index
    %76 = vector.load %arg7[%c3_29, %c0_30] : memref<4x16xf32, #tpu.memory_space<vmem>>, vector<1x16xf32>
    %77 = vector.broadcast %76 : vector<1x16xf32> to vector<8x16xf32>
    %78 = arith.mulf %60, %77 : vector<8x16xf32>
    %cst_31 = arith.constant dense<0.000000e+00> : vector<8xf32>
    %79 = vector.multi_reduction <add>, %78, %cst_31 [1] : vector<8x16xf32> to vector<8xf32>
    %80 = vector.shape_cast %79 : vector<8xf32> to vector<8x1xf32>
    %81 = tpu.concatenate %65, %70, %75, %80 in 1 : vector<8x1xf32>, vector<8x1xf32>, vector<8x1xf32>, vector<8x1xf32> -> vector<8x4xf32>
    %c0_32 = arith.constant 0 : index
    %c0_33 = arith.constant 0 : index
    %82 = vector.load %arg8[%c0_32, %c0_33] : memref<1x4xf32, #tpu.memory_space<vmem>>, vector<1x4xf32>
    %83 = vector.broadcast %82 : vector<1x4xf32> to vector<8x4xf32>
    %84 = arith.addf %81, %83 : vector<8x4xf32>
    %cst_34 = arith.constant dense<0xFF800000> : vector<8xf32>
    %85 = vector.multi_reduction <maximumf>, %84, %cst_34 [1] : vector<8x4xf32> to vector<8xf32>
    %86 = vector.shape_cast %85 : vector<8xf32> to vector<8x1xf32>
    %87 = vector.broadcast %86 : vector<8x1xf32> to vector<8x4xf32>
    %88 = arith.subf %84, %87 : vector<8x4xf32>
    %89 = math.exp %88 : vector<8x4xf32>
    %cst_35 = arith.constant dense<0.000000e+00> : vector<8xf32>
    %90 = vector.multi_reduction <add>, %89, %cst_35 [1] : vector<8x4xf32> to vector<8xf32>
    %91 = vector.shape_cast %90 : vector<8xf32> to vector<8x1xf32>
    %92 = vector.broadcast %91 : vector<8x1xf32> to vector<8x4xf32>
    %93 = arith.divf %89, %92 : vector<8x4xf32>
    %94 = tpu.iota {dimensions = array<i32: 1>} : vector<8x4xi32>
    %cst_36 = arith.constant dense<0xFF800000> : vector<8xf32>
    %95 = vector.multi_reduction <maximumf>, %93, %cst_36 [1] : vector<8x4xf32> to vector<8xf32>
    %96 = vector.shape_cast %95 : vector<8xf32> to vector<8x1xf32>
    %97 = vector.broadcast %96 : vector<8x1xf32> to vector<8x4xf32>
    %98 = arith.cmpf oeq, %93, %97 : vector<8x4xf32>
    %c4_i32 = arith.constant 4 : i32
    %99 = vector.broadcast %c4_i32 : i32 to vector<8x4xi32>
    %100 = arith.select %98, %94, %99 : vector<8x4xi1>, vector<8x4xi32>
    %cst_37 = arith.constant dense<2147483647> : vector<8xi32>
    %101 = vector.multi_reduction <minsi>, %100, %cst_37 [1] : vector<8x4xi32> to vector<8xi32>
    %102 = vector.shape_cast %101 : vector<8xi32> to vector<8x1xi32>
    %103 = vector.broadcast %102 : vector<8x1xi32> to vector<8x4xi32>
    %104 = arith.cmpi eq, %94, %103 : vector<8x4xi32>
    %cst_38 = arith.constant 0xFF800000 : f32
    %105 = vector.broadcast %cst_38 : f32 to vector<8x4xf32>
    %106 = arith.select %104, %105, %93 : vector<8x4xi1>, vector<8x4xf32>
    %cst_39 = arith.constant dense<0xFF800000> : vector<8xf32>
    %107 = vector.multi_reduction <maximumf>, %106, %cst_39 [1] : vector<8x4xf32> to vector<8xf32>
    %108 = vector.shape_cast %107 : vector<8xf32> to vector<8x1xf32>
    %109 = vector.broadcast %108 : vector<8x1xf32> to vector<8x4xf32>
    %110 = arith.cmpf oeq, %106, %109 : vector<8x4xf32>
    %c4_i32_40 = arith.constant 4 : i32
    %111 = vector.broadcast %c4_i32_40 : i32 to vector<8x4xi32>
    %112 = arith.select %110, %94, %111 : vector<8x4xi1>, vector<8x4xi32>
    %cst_41 = arith.constant dense<2147483647> : vector<8xi32>
    %113 = vector.multi_reduction <minsi>, %112, %cst_41 [1] : vector<8x4xi32> to vector<8xi32>
    %114 = vector.shape_cast %113 : vector<8xi32> to vector<8x1xi32>
    %115 = vector.broadcast %102 : vector<8x1xi32> to vector<8x4xi32>
    %116 = arith.cmpi eq, %94, %115 : vector<8x4xi32>
    %117 = vector.broadcast %114 : vector<8x1xi32> to vector<8x4xi32>
    %118 = arith.cmpi eq, %94, %117 : vector<8x4xi32>
    %119 = arith.ori %116, %118 : vector<8x4xi1>
    %120 = arith.extui %119 : vector<8x4xi1> to vector<8x4xi32>
    %121 = arith.sitofp %120 : vector<8x4xi32> to vector<8x4xf32>
    %122 = arith.mulf %93, %121 : vector<8x4xf32>
    %cst_42 = arith.constant dense<0.000000e+00> : vector<8xf32>
    %123 = vector.multi_reduction <add>, %122, %cst_42 [1] : vector<8x4xf32> to vector<8xf32>
    %124 = vector.shape_cast %123 : vector<8xf32> to vector<8x1xf32>
    %cst_43 = arith.constant 9.99999993E-9 : f32
    %125 = vector.broadcast %cst_43 : f32 to vector<8x1xf32>
    %126 = arith.addf %124, %125 : vector<8x1xf32>
    %127 = vector.broadcast %126 : vector<8x1xf32> to vector<8x4xf32>
    %128 = arith.divf %122, %127 : vector<8x4xf32>
    %129 = vector.extract_strided_slice %128 {offsets = [0, 0], sizes = [8, 1], strides = [1, 1]} : vector<8x4xf32> to vector<8x1xf32>
    %130 = vector.extract_strided_slice %5 {offsets = [0, 0], sizes = [8, 128], strides = [1, 1]} : vector<8x512xf32> to vector<8x128xf32>
    %131 = vector.broadcast %129 : vector<8x1xf32> to vector<8x128xf32>
    %132 = arith.mulf %131, %130 : vector<8x128xf32>
    %133 = vector.extract_strided_slice %128 {offsets = [0, 1], sizes = [8, 1], strides = [1, 1]} : vector<8x4xf32> to vector<8x1xf32>
    %134 = vector.extract_strided_slice %5 {offsets = [0, 128], sizes = [8, 128], strides = [1, 1]} : vector<8x512xf32> to vector<8x128xf32>
    %135 = vector.broadcast %133 : vector<8x1xf32> to vector<8x128xf32>
    %136 = arith.mulf %135, %134 : vector<8x128xf32>
    %137 = arith.addf %132, %136 : vector<8x128xf32>
    %138 = vector.extract_strided_slice %128 {offsets = [0, 2], sizes = [8, 1], strides = [1, 1]} : vector<8x4xf32> to vector<8x1xf32>
    %139 = vector.extract_strided_slice %5 {offsets = [0, 256], sizes = [8, 128], strides = [1, 1]} : vector<8x512xf32> to vector<8x128xf32>
    %140 = vector.broadcast %138 : vector<8x1xf32> to vector<8x128xf32>
    %141 = arith.mulf %140, %139 : vector<8x128xf32>
    %142 = arith.addf %137, %141 : vector<8x128xf32>
    %143 = vector.extract_strided_slice %128 {offsets = [0, 3], sizes = [8, 1], strides = [1, 1]} : vector<8x4xf32> to vector<8x1xf32>
    %144 = vector.extract_strided_slice %5 {offsets = [0, 384], sizes = [8, 128], strides = [1, 1]} : vector<8x512xf32> to vector<8x128xf32>
    %145 = vector.broadcast %143 : vector<8x1xf32> to vector<8x128xf32>
    %146 = arith.mulf %145, %144 : vector<8x128xf32>
    %147 = arith.addf %142, %146 : vector<8x128xf32>
    %148 = arith.mulf %128, %31 : vector<8x4xf32>
    %cst_44 = arith.constant dense<0.000000e+00> : vector<8xf32>
    %149 = vector.multi_reduction <add>, %148, %cst_44 [1] : vector<8x4xf32> to vector<8xf32>
    %150 = vector.shape_cast %149 : vector<8xf32> to vector<8x1xf32>
    %151 = tpu.concatenate %102, %114 in 1 : vector<8x1xi32>, vector<8x1xi32> -> vector<8x2xi32>
    %152 = arith.sitofp %151 : vector<8x2xi32> to vector<8x2xf32>
    %cst_45 = arith.constant 0.000000e+00 : f32
    %153 = vector.broadcast %cst_45 : f32 to vector<8x37xf32>
    %154 = vector.extract_strided_slice %147 {offsets = [0, 0], sizes = [8, 80], strides = [1, 1]} : vector<8x128xf32> to vector<8x80xf32>
    %155 = tpu.concatenate %154, %128, %31, %150, %152, %153 in 1 : vector<8x80xf32>, vector<8x4xf32>, vector<8x4xf32>, vector<8x1xf32>, vector<8x2xf32>, vector<8x37xf32> -> vector<8x128xf32>
    %c0_46 = arith.constant 0 : index
    %c0_47 = arith.constant 0 : index
    %156 = vector.load %arg9[%c0_46, %c0_47] : memref<8x128xf32, #tpu.memory_space<vmem>>, vector<8x128xf32>
    tpu.vector_store %arg9[%c0_46, %c0_47], %155 {strides = array<i32>} : memref<8x128xf32, #tpu.memory_space<vmem>>, vector<8x128xf32>,
    return
  }
  func.func @transform_0(%arg0: i32) -> (i32, i32) {
    %c0_i32 = arith.constant 0 : i32
    %c0_i32_0 = arith.constant 0 : i32
    return %arg0, %c0_i32 : i32, i32
  }
  func.func @transform_1(%arg0: i32) -> (i32, i32) {
    %c0_i32 = arith.constant 0 : i32
    %c0_i32_0 = arith.constant 0 : i32
    %c0_i32_1 = arith.constant 0 : i32
    return %c0_i32, %c0_i32_0 : i32, i32
  }
  func.func @transform_2(%arg0: i32) -> (i32, i32) {
    %c0_i32 = arith.constant 0 : i32
    %c0_i32_0 = arith.constant 0 : i32
    %c0_i32_1 = arith.constant 0 : i32
    return %c0_i32, %c0_i32_0 : i32, i32
  }
  func.func @transform_3(%arg0: i32) -> (i32, i32) {
    %c0_i32 = arith.constant 0 : i32
    %c0_i32_0 = arith.constant 0 : i32
    %c0_i32_1 = arith.constant 0 : i32
    return %c0_i32, %c0_i32_0 : i32, i32
  }
  func.func @transform_4(%arg0: i32) -> (i32, i32) {
    %c0_i32 = arith.constant 0 : i32
    %c0_i32_0 = arith.constant 0 : i32
    %c0_i32_1 = arith.constant 0 : i32
    return %c0_i32, %c0_i32_0 : i32, i32
  }
  func.func @transform_5(%arg0: i32) -> (i32, i32) {
    %c0_i32 = arith.constant 0 : i32
    %c0_i32_0 = arith.constant 0 : i32
    %c0_i32_1 = arith.constant 0 : i32
    return %c0_i32, %c0_i32_0 : i32, i32
  }
  func.func @transform_6(%arg0: i32) -> (i32, i32) {
    %c0_i32 = arith.constant 0 : i32
    %c0_i32_0 = arith.constant 0 : i32
    %c0_i32_1 = arith.constant 0 : i32
    return %c0_i32, %c0_i32_0 : i32, i32
  }
  func.func @transform_7(%arg0: i32) -> (i32, i32) {
    %c0_i32 = arith.constant 0 : i32
    %c0_i32_0 = arith.constant 0 : i32
    %c0_i32_1 = arith.constant 0 : i32
    return %c0_i32, %c0_i32_0 : i32, i32
  }
  func.func @transform_8(%arg0: i32) -> (i32, i32) {
    %c0_i32 = arith.constant 0 : i32
    %c0_i32_0 = arith.constant 0 : i32
    return %arg0, %c0_i32 : i32, i32
  }
}

</mosaic_0001>

<llo_original>
// kernel: integrated_moe_forward.1
$region0: #{integrated_moe_forward.1}
  #allocation0 [shape = 'u32[]', space=smem, size = 0x4, offset = 0x4, fixed_abs, tag = 'smem constant byte address 0x4 - core index']
  #allocation1 [shape = 'u32[144,128]{1,0:T(1,128)}', space=vmem, size = 0x12000, scoped, tag = 'internal scratch']
  %s0 = inlined_call_operand.vmem [shape: bf16[8,1024], index: 0, kind: input, shape index: {}]
  %s1 = inlined_call_operand.hbm [shape: bf16[1024,512], index: 1, kind: input, shape index: {}]
  %s2 = inlined_call_operand.vmem [shape: f32[1,512], index: 2, kind: input, shape index: {}]
  %s3 = inlined_call_operand.vmem [shape: f32[4,512], index: 3, kind: input, shape index: {}]
  %s4 = inlined_call_operand.vmem [shape: f32[4,16], index: 4, kind: input, shape index: {}]
  %s5 = inlined_call_operand.vmem [shape: f32[1,16], index: 5, kind: input, shape index: {}]
  %s6 = inlined_call_operand.vmem [shape: f32[4,16], index: 6, kind: input, shape index: {}]
  %s7 = inlined_call_operand.vmem [shape: f32[1,4], index: 7, kind: input, shape index: {}]
  %s8 = inlined_call_operand.vmem [shape: f32[8,128], index: 8, kind: output, shape index: {}]
  %s9 = sld [smem:[#allocation0]]
  $region46: #{integrated_moe_forward.1} parent=0
    _
  %s11 = ssub.s32 1, %s9
  %s12 = scalar_select 0, %s11, %s9
  $region1: #{integrated_moe_forward.1} parent=0
    #allocation2 [shape = 'u8[1048576]{0}', space=vmem, size = 0x100000, scoped, tag = 'input window, operand 1, single buffered']
    #allocation3 [shape = 's32[1]{0}', space=sflag, size = 0x4, scoped, tag = 'scoped memory for integrated_moe_forward.1']
    %13 = vsyncpa [#allocation3], 0
    // Predicated region
    $region2: #{integrated_moe_forward.1} parent=1 // pred_check
      _
    $region3: #{integrated_moe_forward.1} parent=1 // pred_check_branch
      %15 = sbr.rel (0) target = $region5
    $region4: #{integrated_moe_forward.1} parent=1 // pred_region
      _
    $region5: #{integrated_moe_forward.1} parent=1 // pred_fallthru
      _
    // Predicated region
    $region6: #{integrated_moe_forward.1} parent=1 // pred_check
      _
    $region7: #{integrated_moe_forward.1} parent=1 // pred_check_branch
      %17 = sbr.rel (0) target = $region9
    $region8: #{integrated_moe_forward.1} parent=1 // pred_region
      %s19 = ssub.s32 32768, 32768
      %20 = vsyncadd [#allocation3], %s19
      %s21 = sshll.u32 [#allocation2], 4
      %s22 = int_to_ptr.vmem [resolvable:$true] %s21
      %27 = dma.hbm_to_vmem [thread:$0]  %s1, 32768, %s22, [#allocation3], 256, 256, 16
    $region9: #{integrated_moe_forward.1} parent=1 // pred_fallthru
      _
    // Predicated region
    $region10: #{integrated_moe_forward.1} parent=1 // pred_check
      _
    $region11: #{integrated_moe_forward.1} parent=1 // pred_check_branch
      %29 = sbr.rel (0) target = $region13
    $region12: #{integrated_moe_forward.1} parent=1 // pred_region
      _
    $region13: #{integrated_moe_forward.1} parent=1 // pred_fallthru
      _
    // Predicated region
    $region14: #{integrated_moe_forward.1} parent=1 // pred_check
      _
    $region15: #{integrated_moe_forward.1} parent=1 // pred_check_branch
      %31 = sbr.rel (0) target = $region17
    $region16: #{integrated_moe_forward.1} parent=1 // pred_region
      _
    $region17: #{integrated_moe_forward.1} parent=1 // pred_fallthru
      _
    // Predicated region
    $region18: #{integrated_moe_forward.1} parent=1 // pred_check
      _
    $region19: #{integrated_moe_forward.1} parent=1 // pred_check_branch
      %33 = sbr.rel (0) target = $region21
    $region20: #{integrated_moe_forward.1} parent=1 // pred_region
      _
    $region21: #{integrated_moe_forward.1} parent=1 // pred_fallthru
      _
    // Predicated region
    $region22: #{integrated_moe_forward.1} parent=1 // pred_check
      _
    $region23: #{integrated_moe_forward.1} parent=1 // pred_check_branch
      %35 = sbr.rel (0) target = $region25
    $region24: #{integrated_moe_forward.1} parent=1 // pred_region
      _
    $region25: #{integrated_moe_forward.1} parent=1 // pred_fallthru
      _
    // Predicated region
    $region26: #{integrated_moe_forward.1} parent=1 // pred_check
      _
    $region27: #{integrated_moe_forward.1} parent=1 // pred_check_branch
      %37 = sbr.rel (0) target = $region29
    $region28: #{integrated_moe_forward.1} parent=1 // pred_region
      _
    $region29: #{integrated_moe_forward.1} parent=1 // pred_fallthru
      _
    // Predicated region
    $region30: #{integrated_moe_forward.1} parent=1 // pred_check
      _
    $region31: #{integrated_moe_forward.1} parent=1 // pred_check_branch
      %39 = sbr.rel (0) target = $region33
    $region32: #{integrated_moe_forward.1} parent=1 // pred_region
      _
    $region33: #{integrated_moe_forward.1} parent=1 // pred_fallthru
      _
    // Predicated region
    $region34: #{integrated_moe_forward.1} parent=1 // pred_check
      _
    $region35: #{integrated_moe_forward.1} parent=1 // pred_check_branch
      %41 = sbr.rel (0) target = $region37
    $region36: #{integrated_moe_forward.1} parent=1 // pred_region
      %42 = dma.done [#allocation3], 32768
    $region37: #{integrated_moe_forward.1} parent=1 // pred_fallthru
      _
    %v43 = vld [vmem:[%s0] sm:$0xff]
    %v44 = vld [vmem:[%s0 + $0x8] sm:$0xff]
    %v45 = vld [vmem:[%s0 + $0x10] sm:$0xff]
    %v46 = vld [vmem:[%s0 + $0x18] sm:$0xff]
    %v47 = vld [vmem:[#allocation2] sm:$0xff]
    %v48 = vld [vmem:[#allocation2 + $0x8] sm:$0xff]
    %v49 = vld [vmem:[#allocation2 + $0x10] sm:$0xff]
    %v50 = vld [vmem:[#allocation2 + $0x18] sm:$0xff]
    %v51 = vld [vmem:[#allocation2 + $0x20] sm:$0xff]
    %v52 = vld [vmem:[#allocation2 + $0x28] sm:$0xff]
    %v53 = vld [vmem:[#allocation2 + $0x30] sm:$0xff]
    %v54 = vld [vmem:[#allocation2 + $0x38] sm:$0xff]
    %v55 = vld [vmem:[#allocation2 + $0x40] sm:$0xff]
    %v56 = vld [vmem:[#allocation2 + $0x48] sm:$0xff]
    %v57 = vld [vmem:[#allocation2 + $0x50] sm:$0xff]
    %v58 = vld [vmem:[#allocation2 + $0x58] sm:$0xff]
    %v59 = vld [vmem:[#allocation2 + $0x60] sm:$0xff]
    %v60 = vld [vmem:[#allocation2 + $0x68] sm:$0xff]
    %v61 = vld [vmem:[#allocation2 + $0x70] sm:$0xff]
    %v62 = vld [vmem:[#allocation2 + $0x78] sm:$0xff]
    %v63 = vld [vmem:[#allocation2 + $0x80] sm:$0xff]
    %v64 = vld [vmem:[#allocation2 + $0x88] sm:$0xff]
    %v65 = vld [vmem:[#allocation2 + $0x90] sm:$0xff]
    %v66 = vld [vmem:[#allocation2 + $0x98] sm:$0xff]
    %v67 = vld [vmem:[#allocation2 + $0xa0] sm:$0xff]
    %v68 = vld [vmem:[#allocation2 + $0xa8] sm:$0xff]
    %v69 = vld [vmem:[#allocation2 + $0xb0] sm:$0xff]
    %v70 = vld [vmem:[#allocation2 + $0xb8] sm:$0xff]
    %v71 = vld [vmem:[#allocation2 + $0xc0] sm:$0xff]
    %v72 = vld [vmem:[#allocation2 + $0xc8] sm:$0xff]
    %v73 = vld [vmem:[#allocation2 + $0xd0] sm:$0xff]
    %v74 = vld [vmem:[#allocation2 + $0xd8] sm:$0xff]
    %v75 = vld [vmem:[#allocation2 + $0xe0] sm:$0xff]
    %v76 = vld [vmem:[#allocation2 + $0xe8] sm:$0xff]
    %v77 = vld [vmem:[#allocation2 + $0xf0] sm:$0xff]
    %v78 = vld [vmem:[#allocation2 + $0xf8] sm:$0xff]
    %v79 = vld [vmem:[#allocation2 + $0x100] sm:$0xff]
    %v80 = vld [vmem:[#allocation2 + $0x108] sm:$0xff]
    %v81 = vld [vmem:[#allocation2 + $0x110] sm:$0xff]
    %v82 = vld [vmem:[#allocation2 + $0x118] sm:$0xff]
    %v83 = vld [vmem:[#allocation2 + $0x120] sm:$0xff]
    %v84 = vld [vmem:[#allocation2 + $0x128] sm:$0xff]
    %v85 = vld [vmem:[#allocation2 + $0x130] sm:$0xff]
    %v86 = vld [vmem:[#allocation2 + $0x138] sm:$0xff]
    %v87 = vld [vmem:[#allocation2 + $0x140] sm:$0xff]
    %v88 = vld [vmem:[#allocation2 + $0x148] sm:$0xff]
    %v89 = vld [vmem:[#allocation2 + $0x150] sm:$0xff]
    %v90 = vld [vmem:[#allocation2 + $0x158] sm:$0xff]
    %v91 = vld [vmem:[#allocation2 + $0x160] sm:$0xff]
    %v92 = vld [vmem:[#allocation2 + $0x168] sm:$0xff]
    %v93 = vld [vmem:[#allocation2 + $0x170] sm:$0xff]
    %v94 = vld [vmem:[#allocation2 + $0x178] sm:$0xff]
    %v95 = vld [vmem:[#allocation2 + $0x180] sm:$0xff]
    %v96 = vld [vmem:[#allocation2 + $0x188] sm:$0xff]
    %v97 = vld [vmem:[#allocation2 + $0x190] sm:$0xff]
    %v98 = vld [vmem:[#allocation2 + $0x198] sm:$0xff]
    %v99 = vld [vmem:[#allocation2 + $0x1a0] sm:$0xff]
    %v100 = vld [vmem:[#allocation2 + $0x1a8] sm:$0xff]
    %v101 = vld [vmem:[#allocation2 + $0x1b0] sm:$0xff]
    %v102 = vld [vmem:[#allocation2 + $0x1b8] sm:$0xff]
    %v103 = vld [vmem:[#allocation2 + $0x1c0] sm:$0xff]
    %v104 = vld [vmem:[#allocation2 + $0x1c8] sm:$0xff]
    %v105 = vld [vmem:[#allocation2 + $0x1d0] sm:$0xff]
    %v106 = vld [vmem:[#allocation2 + $0x1d8] sm:$0xff]
    %v107 = vld [vmem:[#allocation2 + $0x1e0] sm:$0xff]
    %v108 = vld [vmem:[#allocation2 + $0x1e8] sm:$0xff]
    %v109 = vld [vmem:[#allocation2 + $0x1f0] sm:$0xff]
    %v110 = vld [vmem:[#allocation2 + $0x1f8] sm:$0xff]
    %v111 = vld [vmem:[#allocation2 + $0x200] sm:$0xff]
    %v112 = vld [vmem:[#allocation2 + $0x208] sm:$0xff]
    %v113 = vld [vmem:[#allocation2 + $0x210] sm:$0xff]
    %v114 = vld [vmem:[#allocation2 + $0x218] sm:$0xff]
    %v115 = vld [vmem:[#allocation2 + $0x220] sm:$0xff]
    %v116 = vld [vmem:[#allocation2 + $0x228] sm:$0xff]
    %v117 = vld [vmem:[#allocation2 + $0x230] sm:$0xff]
    %v118 = vld [vmem:[#allocation2 + $0x238] sm:$0xff]
    %v119 = vld [vmem:[#allocation2 + $0x240] sm:$0xff]
    %v120 = vld [vmem:[#allocation2 + $0x248] sm:$0xff]
    %v121 = vld [vmem:[#allocation2 + $0x250] sm:$0xff]
    %v122 = vld [vmem:[#allocation2 + $0x258] sm:$0xff]
    %v123 = vld [vmem:[#allocation2 + $0x260] sm:$0xff]
    %v124 = vld [vmem:[#allocation2 + $0x268] sm:$0xff]
    %v125 = vld [vmem:[#allocation2 + $0x270] sm:$0xff]
    %v126 = vld [vmem:[#allocation2 + $0x278] sm:$0xff]
    %v127 = vld [vmem:[#allocation2 + $0x280] sm:$0xff]
    %v128 = vld [vmem:[#allocation2 + $0x288] sm:$0xff]
    %v129 = vld [vmem:[#allocation2 + $0x290] sm:$0xff]
    %v130 = vld [vmem:[#allocation2 + $0x298] sm:$0xff]
    %v131 = vld [vmem:[#allocation2 + $0x2a0] sm:$0xff]
    %v132 = vld [vmem:[#allocation2 + $0x2a8] sm:$0xff]
    %v133 = vld [vmem:[#allocation2 + $0x2b0] sm:$0xff]
    %v134 = vld [vmem:[#allocation2 + $0x2b8] sm:$0xff]
    %v135 = vld [vmem:[#allocation2 + $0x2c0] sm:$0xff]
    %v136 = vld [vmem:[#allocation2 + $0x2c8] sm:$0xff]
    %v137 = vld [vmem:[#allocation2 + $0x2d0] sm:$0xff]
    %v138 = vld [vmem:[#allocation2 + $0x2d8] sm:$0xff]
    %v139 = vld [vmem:[#allocation2 + $0x2e0] sm:$0xff]
    %v140 = vld [vmem:[#allocation2 + $0x2e8] sm:$0xff]
    %v141 = vld [vmem:[#allocation2 + $0x2f0] sm:$0xff]
    %v142 = vld [vmem:[#allocation2 + $0x2f8] sm:$0xff]
    %v143 = vld [vmem:[#allocation2 + $0x300] sm:$0xff]
    %v144 = vld [vmem:[#allocation2 + $0x308] sm:$0xff]
    %v145 = vld [vmem:[#allocation2 + $0x310] sm:$0xff]
    %v146 = vld [vmem:[#allocation2 + $0x318] sm:$0xff]
    %v147 = vld [vmem:[#allocation2 + $0x320] sm:$0xff]
    %v148 = vld [vmem:[#allocation2 + $0x328] sm:$0xff]
    %v149 = vld [vmem:[#allocation2 + $0x330] sm:$0xff]
    %v150 = vld [vmem:[#allocation2 + $0x338] sm:$0xff]
    %v151 = vld [vmem:[#allocation2 + $0x340] sm:$0xff]
    %v152 = vld [vmem:[#allocation2 + $0x348] sm:$0xff]
    %v153 = vld [vmem:[#allocation2 + $0x350] sm:$0xff]
    %v154 = vld [vmem:[#allocation2 + $0x358] sm:$0xff]
    %v155 = vld [vmem:[#allocation2 + $0x360] sm:$0xff]
    %v156 = vld [vmem:[#allocation2 + $0x368] sm:$0xff]
    %v157 = vld [vmem:[#allocation2 + $0x370] sm:$0xff]
    %v158 = vld [vmem:[#allocation2 + $0x378] sm:$0xff]
    %v159 = vld [vmem:[#allocation2 + $0x380] sm:$0xff]
    %v160 = vld [vmem:[#allocation2 + $0x388] sm:$0xff]
    %v161 = vld [vmem:[#allocation2 + $0x390] sm:$0xff]
    %v162 = vld [vmem:[#allocation2 + $0x398] sm:$0xff]
    %v163 = vld [vmem:[#allocation2 + $0x3a0] sm:$0xff]
    %v164 = vld [vmem:[#allocation2 + $0x3a8] sm:$0xff]
    %v165 = vld [vmem:[#allocation2 + $0x3b0] sm:$0xff]
    %v166 = vld [vmem:[#allocation2 + $0x3b8] sm:$0xff]
    %v167 = vld [vmem:[#allocation2 + $0x3c0] sm:$0xff]
    %v168 = vld [vmem:[#allocation2 + $0x3c8] sm:$0xff]
    %v169 = vld [vmem:[#allocation2 + $0x3d0] sm:$0xff]
    %v170 = vld [vmem:[#allocation2 + $0x3d8] sm:$0xff]
    %v171 = vld [vmem:[#allocation2 + $0x3e0] sm:$0xff]
    %v172 = vld [vmem:[#allocation2 + $0x3e8] sm:$0xff]
    %v173 = vld [vmem:[#allocation2 + $0x3f0] sm:$0xff]
    %v174 = vld [vmem:[#allocation2 + $0x3f8] sm:$0xff]
    %v175 = vld [vmem:[#allocation2 + $0x400] sm:$0xff]
    %v176 = vld [vmem:[#allocation2 + $0x408] sm:$0xff]
    %v177 = vld [vmem:[#allocation2 + $0x410] sm:$0xff]
    %v178 = vld [vmem:[#allocation2 + $0x418] sm:$0xff]
    %v179 = vld [vmem:[#allocation2 + $0x420] sm:$0xff]
    %v180 = vld [vmem:[#allocation2 + $0x428] sm:$0xff]
    %v181 = vld [vmem:[#allocation2 + $0x430] sm:$0xff]
    %v182 = vld [vmem:[#allocation2 + $0x438] sm:$0xff]
    %v183 = vld [vmem:[#allocation2 + $0x440] sm:$0xff]
    %v184 = vld [vmem:[#allocation2 + $0x448] sm:$0xff]
    %v185 = vld [vmem:[#allocation2 + $0x450] sm:$0xff]
    %v186 = vld [vmem:[#allocation2 + $0x458] sm:$0xff]
    %v187 = vld [vmem:[#allocation2 + $0x460] sm:$0xff]
    %v188 = vld [vmem:[#allocation2 + $0x468] sm:$0xff]
    %v189 = vld [vmem:[#allocation2 + $0x470] sm:$0xff]
    %v190 = vld [vmem:[#allocation2 + $0x478] sm:$0xff]
    %v191 = vld [vmem:[#allocation2 + $0x480] sm:$0xff]
    %v192 = vld [vmem:[#allocation2 + $0x488] sm:$0xff]
    %v193 = vld [vmem:[#allocation2 + $0x490] sm:$0xff]
    %v194 = vld [vmem:[#allocation2 + $0x498] sm:$0xff]
    %v195 = vld [vmem:[#allocation2 + $0x4a0] sm:$0xff]
    %v196 = vld [vmem:[#allocation2 + $0x4a8] sm:$0xff]
    %v197 = vld [vmem:[#allocation2 + $0x4b0] sm:$0xff]
    %v198 = vld [vmem:[#allocation2 + $0x4b8] sm:$0xff]
    %v199 = vld [vmem:[#allocation2 + $0x4c0] sm:$0xff]
    %v200 = vld [vmem:[#allocation2 + $0x4c8] sm:$0xff]
    %v201 = vld [vmem:[#allocation2 + $0x4d0] sm:$0xff]
    %v202 = vld [vmem:[#allocation2 + $0x4d8] sm:$0xff]
    %v203 = vld [vmem:[#allocation2 + $0x4e0] sm:$0xff]
    %v204 = vld [vmem:[#allocation2 + $0x4e8] sm:$0xff]
    %v205 = vld [vmem:[#allocation2 + $0x4f0] sm:$0xff]
    %v206 = vld [vmem:[#allocation2 + $0x4f8] sm:$0xff]
    %v207 = vld [vmem:[#allocation2 + $0x500] sm:$0xff]
    %v208 = vld [vmem:[#allocation2 + $0x508] sm:$0xff]
    %v209 = vld [vmem:[#allocation2 + $0x510] sm:$0xff]
    %v210 = vld [vmem:[#allocation2 + $0x518] sm:$0xff]
    %v211 = vld [vmem:[#allocation2 + $0x520] sm:$0xff]
    %v212 = vld [vmem:[#allocation2 + $0x528] sm:$0xff]
    %v213 = vld [vmem:[#allocation2 + $0x530] sm:$0xff]
    %v214 = vld [vmem:[#allocation2 + $0x538] sm:$0xff]
    %v215 = vld [vmem:[#allocation2 + $0x540] sm:$0xff]
    %v216 = vld [vmem:[#allocation2 + $0x548] sm:$0xff]
    %v217 = vld [vmem:[#allocation2 + $0x550] sm:$0xff]
    %v218 = vld [vmem:[#allocation2 + $0x558] sm:$0xff]
    %v219 = vld [vmem:[#allocation2 + $0x560] sm:$0xff]
    %v220 = vld [vmem:[#allocation2 + $0x568] sm:$0xff]
    %v221 = vld [vmem:[#allocation2 + $0x570] sm:$0xff]
    %v222 = vld [vmem:[#allocation2 + $0x578] sm:$0xff]
    %v223 = vld [vmem:[#allocation2 + $0x580] sm:$0xff]
    %v224 = vld [vmem:[#allocation2 + $0x588] sm:$0xff]
    %v225 = vld [vmem:[#allocation2 + $0x590] sm:$0xff]
    %v226 = vld [vmem:[#allocation2 + $0x598] sm:$0xff]
    %v227 = vld [vmem:[#allocation2 + $0x5a0] sm:$0xff]
    %v228 = vld [vmem:[#allocation2 + $0x5a8] sm:$0xff]
    %v229 = vld [vmem:[#allocation2 + $0x5b0] sm:$0xff]
    %v230 = vld [vmem:[#allocation2 + $0x5b8] sm:$0xff]
    %v231 = vld [vmem:[#allocation2 + $0x5c0] sm:$0xff]
    %v232 = vld [vmem:[#allocation2 + $0x5c8] sm:$0xff]
    %v233 = vld [vmem:[#allocation2 + $0x5d0] sm:$0xff]
    %v234 = vld [vmem:[#allocation2 + $0x5d8] sm:$0xff]
    %v235 = vld [vmem:[#allocation2 + $0x5e0] sm:$0xff]
    %v236 = vld [vmem:[#allocation2 + $0x5e8] sm:$0xff]
    %v237 = vld [vmem:[#allocation2 + $0x5f0] sm:$0xff]
    %v238 = vld [vmem:[#allocation2 + $0x5f8] sm:$0xff]
    %v239 = vld [vmem:[#allocation2 + $0x600] sm:$0xff]
    %v240 = vld [vmem:[#allocation2 + $0x608] sm:$0xff]
    %v241 = vld [vmem:[#allocation2 + $0x610] sm:$0xff]
    %v242 = vld [vmem:[#allocation2 + $0x618] sm:$0xff]
    %v243 = vld [vmem:[#allocation2 + $0x620] sm:$0xff]
    %v244 = vld [vmem:[#allocation2 + $0x628] sm:$0xff]
    %v245 = vld [vmem:[#allocation2 + $0x630] sm:$0xff]
    %v246 = vld [vmem:[#allocation2 + $0x638] sm:$0xff]
    %v247 = vld [vmem:[#allocation2 + $0x640] sm:$0xff]
    %v248 = vld [vmem:[#allocation2 + $0x648] sm:$0xff]
    %v249 = vld [vmem:[#allocation2 + $0x650] sm:$0xff]
    %v250 = vld [vmem:[#allocation2 + $0x658] sm:$0xff]
    %v251 = vld [vmem:[#allocation2 + $0x660] sm:$0xff]
    %v252 = vld [vmem:[#allocation2 + $0x668] sm:$0xff]
    %v253 = vld [vmem:[#allocation2 + $0x670] sm:$0xff]
    %v254 = vld [vmem:[#allocation2 + $0x678] sm:$0xff]
    %v255 = vld [vmem:[#allocation2 + $0x680] sm:$0xff]
    %v256 = vld [vmem:[#allocation2 + $0x688] sm:$0xff]
    %v257 = vld [vmem:[#allocation2 + $0x690] sm:$0xff]
    %v258 = vld [vmem:[#allocation2 + $0x698] sm:$0xff]
    %v259 = vld [vmem:[#allocation2 + $0x6a0] sm:$0xff]
    %v260 = vld [vmem:[#allocation2 + $0x6a8] sm:$0xff]
    %v261 = vld [vmem:[#allocation2 + $0x6b0] sm:$0xff]
    %v262 = vld [vmem:[#allocation2 + $0x6b8] sm:$0xff]
    %v263 = vld [vmem:[#allocation2 + $0x6c0] sm:$0xff]
    %v264 = vld [vmem:[#allocation2 + $0x6c8] sm:$0xff]
    %v265 = vld [vmem:[#allocation2 + $0x6d0] sm:$0xff]
    %v266 = vld [vmem:[#allocation2 + $0x6d8] sm:$0xff]
    %v267 = vld [vmem:[#allocation2 + $0x6e0] sm:$0xff]
    %v268 = vld [vmem:[#allocation2 + $0x6e8] sm:$0xff]
    %v269 = vld [vmem:[#allocation2 + $0x6f0] sm:$0xff]
    %v270 = vld [vmem:[#allocation2 + $0x6f8] sm:$0xff]
    %v271 = vld [vmem:[#allocation2 + $0x700] sm:$0xff]
    %v272 = vld [vmem:[#allocation2 + $0x708] sm:$0xff]
    %v273 = vld [vmem:[#allocation2 + $0x710] sm:$0xff]
    %v274 = vld [vmem:[#allocation2 + $0x718] sm:$0xff]
    %v275 = vld [vmem:[#allocation2 + $0x720] sm:$0xff]
    %v276 = vld [vmem:[#allocation2 + $0x728] sm:$0xff]
    %v277 = vld [vmem:[#allocation2 + $0x730] sm:$0xff]
    %v278 = vld [vmem:[#allocation2 + $0x738] sm:$0xff]
    %v279 = vld [vmem:[#allocation2 + $0x740] sm:$0xff]
    %v280 = vld [vmem:[#allocation2 + $0x748] sm:$0xff]
    %v281 = vld [vmem:[#allocation2 + $0x750] sm:$0xff]
    %v282 = vld [vmem:[#allocation2 + $0x758] sm:$0xff]
    %v283 = vld [vmem:[#allocation2 + $0x760] sm:$0xff]
    %v284 = vld [vmem:[#allocation2 + $0x768] sm:$0xff]
    %v285 = vld [vmem:[#allocation2 + $0x770] sm:$0xff]
    %v286 = vld [vmem:[#allocation2 + $0x778] sm:$0xff]
    %v287 = vld [vmem:[#allocation2 + $0x780] sm:$0xff]
    %v288 = vld [vmem:[#allocation2 + $0x788] sm:$0xff]
    %v289 = vld [vmem:[#allocation2 + $0x790] sm:$0xff]
    %v290 = vld [vmem:[#allocation2 + $0x798] sm:$0xff]
    %v291 = vld [vmem:[#allocation2 + $0x7a0] sm:$0xff]
    %v292 = vld [vmem:[#allocation2 + $0x7a8] sm:$0xff]
    %v293 = vld [vmem:[#allocation2 + $0x7b0] sm:$0xff]
    %v294 = vld [vmem:[#allocation2 + $0x7b8] sm:$0xff]
    %v295 = vld [vmem:[#allocation2 + $0x7c0] sm:$0xff]
    %v296 = vld [vmem:[#allocation2 + $0x7c8] sm:$0xff]
    %v297 = vld [vmem:[#allocation2 + $0x7d0] sm:$0xff]
    %v298 = vld [vmem:[#allocation2 + $0x7d8] sm:$0xff]
    %v299 = vld [vmem:[#allocation2 + $0x7e0] sm:$0xff]
    %v300 = vld [vmem:[#allocation2 + $0x7e8] sm:$0xff]
    %v301 = vld [vmem:[#allocation2 + $0x7f0] sm:$0xff]
    %v302 = vld [vmem:[#allocation2 + $0x7f8] sm:$0xff]
    %v303 = vld [vmem:[%s2] sm:$0xf]
    %v305 = vlaneseq
    %v306 = vshrl.u32 %v305, 7
    %v307 = vsub.s32 0, %v306
    %v308 = vrot.slane %v303, %v307
    %v309 = vlaneseq
    %v310 = vshrl.u32 %v309, 7
    %v311 = vsub.s32 1, %v310
    %v312 = vrot.slane %v303, %v311
    %v313 = vlaneseq
    %v314 = vshrl.u32 %v313, 7
    %v315 = vsub.s32 2, %v314
    %v316 = vrot.slane %v303, %v315
    %v317 = vlaneseq
    %v318 = vshrl.u32 %v317, 7
    %v319 = vsub.s32 3, %v318
    %v320 = vrot.slane %v303, %v319
    %v329 = vunpack.c.l.b16 %v43
    %v330 = vunpack.c.h.b16 %v43
    %v331 = vunpack.c.l.b16 %v44
    %v332 = vunpack.c.h.b16 %v44
    %v333 = vunpack.c.l.b16 %v45
    %v334 = vunpack.c.h.b16 %v45
    %v335 = vunpack.c.l.b16 %v46
    %v336 = vunpack.c.h.b16 %v46
    %v337 = vpack.c.b16 %v329, %v329
    %v338 = vpack.c.b16 %v330, %v330
    %v339 = vpack.c.b16 %v331, %v331
    %v340 = vpack.c.b16 %v332, %v332
    %v341 = vpack.c.b16 %v333, %v333
    %v342 = vpack.c.b16 %v334, %v334
    %v343 = vpack.c.b16 %v335, %v335
    %v344 = vpack.c.b16 %v336, %v336
    %v609 = vunpack.c.l.b16 %v47
    %v610 = vunpack.c.h.b16 %v47
    %v611 = vunpack.c.l.b16 %v48
    %v612 = vunpack.c.h.b16 %v48
    %v613 = vunpack.c.l.b16 %v49
    %v614 = vunpack.c.h.b16 %v49
    %v615 = vunpack.c.l.b16 %v50
    %v616 = vunpack.c.h.b16 %v50
    %v617 = vunpack.c.l.b16 %v51
    %v618 = vunpack.c.h.b16 %v51
    %v619 = vunpack.c.l.b16 %v52
    %v620 = vunpack.c.h.b16 %v52
    %v621 = vunpack.c.l.b16 %v53
    %v622 = vunpack.c.h.b16 %v53
    %v623 = vunpack.c.l.b16 %v54
    %v624 = vunpack.c.h.b16 %v54
    %v625 = vunpack.c.l.b16 %v55
    %v626 = vunpack.c.h.b16 %v55
    %v627 = vunpack.c.l.b16 %v56
    %v628 = vunpack.c.h.b16 %v56
    %v629 = vunpack.c.l.b16 %v57
    %v630 = vunpack.c.h.b16 %v57
    %v631 = vunpack.c.l.b16 %v58
    %v632 = vunpack.c.h.b16 %v58
    %v633 = vunpack.c.l.b16 %v59
    %v634 = vunpack.c.h.b16 %v59
    %v635 = vunpack.c.l.b16 %v60
    %v636 = vunpack.c.h.b16 %v60
    %v637 = vunpack.c.l.b16 %v61
    %v638 = vunpack.c.h.b16 %v61
    %v639 = vunpack.c.l.b16 %v62
    %v640 = vunpack.c.h.b16 %v62
    %v641 = vunpack.c.l.b16 %v63
    %v642 = vunpack.c.h.b16 %v63
    %v643 = vunpack.c.l.b16 %v64
    %v644 = vunpack.c.h.b16 %v64
    %v645 = vunpack.c.l.b16 %v65
    %v646 = vunpack.c.h.b16 %v65
    %v647 = vunpack.c.l.b16 %v66
    %v648 = vunpack.c.h.b16 %v66
    %v649 = vunpack.c.l.b16 %v67
    %v650 = vunpack.c.h.b16 %v67
    %v651 = vunpack.c.l.b16 %v68
    %v652 = vunpack.c.h.b16 %v68
    %v653 = vunpack.c.l.b16 %v69
    %v654 = vunpack.c.h.b16 %v69
    %v655 = vunpack.c.l.b16 %v70
    %v656 = vunpack.c.h.b16 %v70
    %v657 = vunpack.c.l.b16 %v71
    %v658 = vunpack.c.h.b16 %v71
    %v659 = vunpack.c.l.b16 %v72
    %v660 = vunpack.c.h.b16 %v72
    %v661 = vunpack.c.l.b16 %v73
    %v662 = vunpack.c.h.b16 %v73
    %v663 = vunpack.c.l.b16 %v74
    %v664 = vunpack.c.h.b16 %v74
    %v665 = vunpack.c.l.b16 %v75
    %v666 = vunpack.c.h.b16 %v75
    %v667 = vunpack.c.l.b16 %v76
    %v668 = vunpack.c.h.b16 %v76
    %v669 = vunpack.c.l.b16 %v77
    %v670 = vunpack.c.h.b16 %v77
    %v671 = vunpack.c.l.b16 %v78
    %v672 = vunpack.c.h.b16 %v78
    %v673 = vunpack.c.l.b16 %v79
    %v674 = vunpack.c.h.b16 %v79
    %v675 = vunpack.c.l.b16 %v80
    %v676 = vunpack.c.h.b16 %v80
    %v677 = vunpack.c.l.b16 %v81
    %v678 = vunpack.c.h.b16 %v81
    %v679 = vunpack.c.l.b16 %v82
    %v680 = vunpack.c.h.b16 %v82
    %v681 = vunpack.c.l.b16 %v83
    %v682 = vunpack.c.h.b16 %v83
    %v683 = vunpack.c.l.b16 %v84
    %v684 = vunpack.c.h.b16 %v84
    %v685 = vunpack.c.l.b16 %v85
    %v686 = vunpack.c.h.b16 %v85
    %v687 = vunpack.c.l.b16 %v86
    %v688 = vunpack.c.h.b16 %v86
    %v689 = vunpack.c.l.b16 %v87
    %v690 = vunpack.c.h.b16 %v87
    %v691 = vunpack.c.l.b16 %v88
    %v692 = vunpack.c.h.b16 %v88
    %v693 = vunpack.c.l.b16 %v89
    %v694 = vunpack.c.h.b16 %v89
    %v695 = vunpack.c.l.b16 %v90
    %v696 = vunpack.c.h.b16 %v90
    %v697 = vunpack.c.l.b16 %v91
    %v698 = vunpack.c.h.b16 %v91
    %v699 = vunpack.c.l.b16 %v92
    %v700 = vunpack.c.h.b16 %v92
    %v701 = vunpack.c.l.b16 %v93
    %v702 = vunpack.c.h.b16 %v93
    %v703 = vunpack.c.l.b16 %v94
    %v704 = vunpack.c.h.b16 %v94
    %v705 = vunpack.c.l.b16 %v95
    %v706 = vunpack.c.h.b16 %v95
    %v707 = vunpack.c.l.b16 %v96
    %v708 = vunpack.c.h.b16 %v96
    %v709 = vunpack.c.l.b16 %v97
    %v710 = vunpack.c.h.b16 %v97
    %v711 = vunpack.c.l.b16 %v98
    %v712 = vunpack.c.h.b16 %v98
    %v713 = vunpack.c.l.b16 %v99
    %v714 = vunpack.c.h.b16 %v99
    %v715 = vunpack.c.l.b16 %v100
    %v716 = vunpack.c.h.b16 %v100
    %v717 = vunpack.c.l.b16 %v101
    %v718 = vunpack.c.h.b16 %v101
    %v719 = vunpack.c.l.b16 %v102
    %v720 = vunpack.c.h.b16 %v102
    %v721 = vunpack.c.l.b16 %v103
    %v722 = vunpack.c.h.b16 %v103
    %v723 = vunpack.c.l.b16 %v104
    %v724 = vunpack.c.h.b16 %v104
    %v725 = vunpack.c.l.b16 %v105
    %v726 = vunpack.c.h.b16 %v105
    %v727 = vunpack.c.l.b16 %v106
    %v728 = vunpack.c.h.b16 %v106
    %v729 = vunpack.c.l.b16 %v107
    %v730 = vunpack.c.h.b16 %v107
    %v731 = vunpack.c.l.b16 %v108
    %v732 = vunpack.c.h.b16 %v108
    %v733 = vunpack.c.l.b16 %v109
    %v734 = vunpack.c.h.b16 %v109
    %v735 = vunpack.c.l.b16 %v110
    %v736 = vunpack.c.h.b16 %v110
    %v737 = vunpack.c.l.b16 %v111
    %v738 = vunpack.c.h.b16 %v111
    %v739 = vunpack.c.l.b16 %v112
    %v740 = vunpack.c.h.b16 %v112
    %v741 = vunpack.c.l.b16 %v113
    %v742 = vunpack.c.h.b16 %v113
    %v743 = vunpack.c.l.b16 %v114
    %v744 = vunpack.c.h.b16 %v114
    %v745 = vunpack.c.l.b16 %v115
    %v746 = vunpack.c.h.b16 %v115
    %v747 = vunpack.c.l.b16 %v116
    %v748 = vunpack.c.h.b16 %v116
    %v749 = vunpack.c.l.b16 %v117
    %v750 = vunpack.c.h.b16 %v117
    %v751 = vunpack.c.l.b16 %v118
    %v752 = vunpack.c.h.b16 %v118
    %v753 = vunpack.c.l.b16 %v119
    %v754 = vunpack.c.h.b16 %v119
    %v755 = vunpack.c.l.b16 %v120
    %v756 = vunpack.c.h.b16 %v120
    %v757 = vunpack.c.l.b16 %v121
    %v758 = vunpack.c.h.b16 %v121
    %v759 = vunpack.c.l.b16 %v122
    %v760 = vunpack.c.h.b16 %v122
    %v761 = vunpack.c.l.b16 %v123
    %v762 = vunpack.c.h.b16 %v123
    %v763 = vunpack.c.l.b16 %v124
    %v764 = vunpack.c.h.b16 %v124
    %v765 = vunpack.c.l.b16 %v125
    %v766 = vunpack.c.h.b16 %v125
    %v767 = vunpack.c.l.b16 %v126
    %v768 = vunpack.c.h.b16 %v126
    %v769 = vunpack.c.l.b16 %v127
    %v770 = vunpack.c.h.b16 %v127
    %v771 = vunpack.c.l.b16 %v128
    %v772 = vunpack.c.h.b16 %v128
    %v773 = vunpack.c.l.b16 %v129
    %v774 = vunpack.c.h.b16 %v129
    %v775 = vunpack.c.l.b16 %v130
    %v776 = vunpack.c.h.b16 %v130
    %v777 = vunpack.c.l.b16 %v131
    %v778 = vunpack.c.h.b16 %v131
    %v779 = vunpack.c.l.b16 %v132
    %v780 = vunpack.c.h.b16 %v132
    %v781 = vunpack.c.l.b16 %v133
    %v782 = vunpack.c.h.b16 %v133
    %v783 = vunpack.c.l.b16 %v134
    %v784 = vunpack.c.h.b16 %v134
    %v785 = vunpack.c.l.b16 %v135
    %v786 = vunpack.c.h.b16 %v135
    %v787 = vunpack.c.l.b16 %v136
    %v788 = vunpack.c.h.b16 %v136
    %v789 = vunpack.c.l.b16 %v137
    %v790 = vunpack.c.h.b16 %v137
    %v791 = vunpack.c.l.b16 %v138
    %v792 = vunpack.c.h.b16 %v138
    %v793 = vunpack.c.l.b16 %v139
    %v794 = vunpack.c.h.b16 %v139
    %v795 = vunpack.c.l.b16 %v140
    %v796 = vunpack.c.h.b16 %v140
    %v797 = vunpack.c.l.b16 %v141
    %v798 = vunpack.c.h.b16 %v141
    %v799 = vunpack.c.l.b16 %v142
    %v800 = vunpack.c.h.b16 %v142
    %v801 = vunpack.c.l.b16 %v143
    %v802 = vunpack.c.h.b16 %v143
    %v803 = vunpack.c.l.b16 %v144
    %v804 = vunpack.c.h.b16 %v144
    %v805 = vunpack.c.l.b16 %v145
    %v806 = vunpack.c.h.b16 %v145
    %v807 = vunpack.c.l.b16 %v146
    %v808 = vunpack.c.h.b16 %v146
    %v809 = vunpack.c.l.b16 %v147
    %v810 = vunpack.c.h.b16 %v147
    %v811 = vunpack.c.l.b16 %v148
    %v812 = vunpack.c.h.b16 %v148
    %v813 = vunpack.c.l.b16 %v149
    %v814 = vunpack.c.h.b16 %v149
    %v815 = vunpack.c.l.b16 %v150
    %v816 = vunpack.c.h.b16 %v150
    %v817 = vunpack.c.l.b16 %v151
    %v818 = vunpack.c.h.b16 %v151
    %v819 = vunpack.c.l.b16 %v152
    %v820 = vunpack.c.h.b16 %v152
    %v821 = vunpack.c.l.b16 %v153
    %v822 = vunpack.c.h.b16 %v153
    %v823 = vunpack.c.l.b16 %v154
    %v824 = vunpack.c.h.b16 %v154
    %v825 = vunpack.c.l.b16 %v155
    %v826 = vunpack.c.h.b16 %v155
    %v827 = vunpack.c.l.b16 %v156
    %v828 = vunpack.c.h.b16 %v156
    %v829 = vunpack.c.l.b16 %v157
    %v830 = vunpack.c.h.b16 %v157
    %v831 = vunpack.c.l.b16 %v158
    %v832 = vunpack.c.h.b16 %v158
    %v833 = vunpack.c.l.b16 %v159
    %v834 = vunpack.c.h.b16 %v159
    %v835 = vunpack.c.l.b16 %v160
    %v836 = vunpack.c.h.b16 %v160
    %v837 = vunpack.c.l.b16 %v161
    %v838 = vunpack.c.h.b16 %v161
    %v839 = vunpack.c.l.b16 %v162
    %v840 = vunpack.c.h.b16 %v162
    %v841 = vunpack.c.l.b16 %v163
    %v842 = vunpack.c.h.b16 %v163
    %v843 = vunpack.c.l.b16 %v164
    %v844 = vunpack.c.h.b16 %v164
    %v845 = vunpack.c.l.b16 %v165
    %v846 = vunpack.c.h.b16 %v165
    %v847 = vunpack.c.l.b16 %v166
    %v848 = vunpack.c.h.b16 %v166
    %v849 = vunpack.c.l.b16 %v167
    %v850 = vunpack.c.h.b16 %v167
    %v851 = vunpack.c.l.b16 %v168
    %v852 = vunpack.c.h.b16 %v168
    %v853 = vunpack.c.l.b16 %v169
    %v854 = vunpack.c.h.b16 %v169
    %v855 = vunpack.c.l.b16 %v170
    %v856 = vunpack.c.h.b16 %v170
    %v857 = vunpack.c.l.b16 %v171
    %v858 = vunpack.c.h.b16 %v171
    %v859 = vunpack.c.l.b16 %v172
    %v860 = vunpack.c.h.b16 %v172
    %v861 = vunpack.c.l.b16 %v173
    %v862 = vunpack.c.h.b16 %v173
    %v863 = vunpack.c.l.b16 %v174
    %v864 = vunpack.c.h.b16 %v174
    %v865 = vunpack.c.l.b16 %v175
    %v866 = vunpack.c.h.b16 %v175
    %v867 = vunpack.c.l.b16 %v176
    %v868 = vunpack.c.h.b16 %v176
    %v869 = vunpack.c.l.b16 %v177
    %v870 = vunpack.c.h.b16 %v177
    %v871 = vunpack.c.l.b16 %v178
    %v872 = vunpack.c.h.b16 %v178
    %v873 = vunpack.c.l.b16 %v179
    %v874 = vunpack.c.h.b16 %v179
    %v875 = vunpack.c.l.b16 %v180
    %v876 = vunpack.c.h.b16 %v180
    %v877 = vunpack.c.l.b16 %v181
    %v878 = vunpack.c.h.b16 %v181
    %v879 = vunpack.c.l.b16 %v182
    %v880 = vunpack.c.h.b16 %v182
    %v881 = vunpack.c.l.b16 %v183
    %v882 = vunpack.c.h.b16 %v183
    %v883 = vunpack.c.l.b16 %v184
    %v884 = vunpack.c.h.b16 %v184
    %v885 = vunpack.c.l.b16 %v185
    %v886 = vunpack.c.h.b16 %v185
    %v887 = vunpack.c.l.b16 %v186
    %v888 = vunpack.c.h.b16 %v186
    %v889 = vunpack.c.l.b16 %v187
    %v890 = vunpack.c.h.b16 %v187
    %v891 = vunpack.c.l.b16 %v188
    %v892 = vunpack.c.h.b16 %v188
    %v893 = vunpack.c.l.b16 %v189
    %v894 = vunpack.c.h.b16 %v189
    %v895 = vunpack.c.l.b16 %v190
    %v896 = vunpack.c.h.b16 %v190
    %v897 = vunpack.c.l.b16 %v191
    %v898 = vunpack.c.h.b16 %v191
    %v899 = vunpack.c.l.b16 %v192
    %v900 = vunpack.c.h.b16 %v192
    %v901 = vunpack.c.l.b16 %v193
    %v902 = vunpack.c.h.b16 %v193
    %v903 = vunpack.c.l.b16 %v194
    %v904 = vunpack.c.h.b16 %v194
    %v905 = vunpack.c.l.b16 %v195
    %v906 = vunpack.c.h.b16 %v195
    %v907 = vunpack.c.l.b16 %v196
    %v908 = vunpack.c.h.b16 %v196
    %v909 = vunpack.c.l.b16 %v197
    %v910 = vunpack.c.h.b16 %v197
    %v911 = vunpack.c.l.b16 %v198
    %v912 = vunpack.c.h.b16 %v198
    %v913 = vunpack.c.l.b16 %v199
    %v914 = vunpack.c.h.b16 %v199
    %v915 = vunpack.c.l.b16 %v200
    %v916 = vunpack.c.h.b16 %v200
    %v917 = vunpack.c.l.b16 %v201
    %v918 = vunpack.c.h.b16 %v201
    %v919 = vunpack.c.l.b16 %v202
    %v920 = vunpack.c.h.b16 %v202
    %v921 = vunpack.c.l.b16 %v203
    %v922 = vunpack.c.h.b16 %v203
    %v923 = vunpack.c.l.b16 %v204
    %v924 = vunpack.c.h.b16 %v204
    %v925 = vunpack.c.l.b16 %v205
    %v926 = vunpack.c.h.b16 %v205
    %v927 = vunpack.c.l.b16 %v206
    %v928 = vunpack.c.h.b16 %v206
    %v929 = vunpack.c.l.b16 %v207
    %v930 = vunpack.c.h.b16 %v207
    %v931 = vunpack.c.l.b16 %v208
    %v932 = vunpack.c.h.b16 %v208
    %v933 = vunpack.c.l.b16 %v209
    %v934 = vunpack.c.h.b16 %v209
    %v935 = vunpack.c.l.b16 %v210
    %v936 = vunpack.c.h.b16 %v210
    %v937 = vunpack.c.l.b16 %v211
    %v938 = vunpack.c.h.b16 %v211
    %v939 = vunpack.c.l.b16 %v212
    %v940 = vunpack.c.h.b16 %v212
    %v941 = vunpack.c.l.b16 %v213
    %v942 = vunpack.c.h.b16 %v213
    %v943 = vunpack.c.l.b16 %v214
    %v944 = vunpack.c.h.b16 %v214
    %v945 = vunpack.c.l.b16 %v215
    %v946 = vunpack.c.h.b16 %v215
    %v947 = vunpack.c.l.b16 %v216
    %v948 = vunpack.c.h.b16 %v216
    %v949 = vunpack.c.l.b16 %v217
    %v950 = vunpack.c.h.b16 %v217
    %v951 = vunpack.c.l.b16 %v218
    %v952 = vunpack.c.h.b16 %v218
    %v953 = vunpack.c.l.b16 %v219
    %v954 = vunpack.c.h.b16 %v219
    %v955 = vunpack.c.l.b16 %v220
    %v956 = vunpack.c.h.b16 %v220
    %v957 = vunpack.c.l.b16 %v221
    %v958 = vunpack.c.h.b16 %v221
    %v959 = vunpack.c.l.b16 %v222
    %v960 = vunpack.c.h.b16 %v222
    %v961 = vunpack.c.l.b16 %v223
    %v962 = vunpack.c.h.b16 %v223
    %v963 = vunpack.c.l.b16 %v224
    %v964 = vunpack.c.h.b16 %v224
    %v965 = vunpack.c.l.b16 %v225
    %v966 = vunpack.c.h.b16 %v225
    %v967 = vunpack.c.l.b16 %v226
    %v968 = vunpack.c.h.b16 %v226
    %v969 = vunpack.c.l.b16 %v227
    %v970 = vunpack.c.h.b16 %v227
    %v971 = vunpack.c.l.b16 %v228
    %v972 = vunpack.c.h.b16 %v228
    %v973 = vunpack.c.l.b16 %v229
    %v974 = vunpack.c.h.b16 %v229
    %v975 = vunpack.c.l.b16 %v230
    %v976 = vunpack.c.h.b16 %v230
    %v977 = vunpack.c.l.b16 %v231
    %v978 = vunpack.c.h.b16 %v231
    %v979 = vunpack.c.l.b16 %v232
    %v980 = vunpack.c.h.b16 %v232
    %v981 = vunpack.c.l.b16 %v233
    %v982 = vunpack.c.h.b16 %v233
    %v983 = vunpack.c.l.b16 %v234
    %v984 = vunpack.c.h.b16 %v234
    %v985 = vunpack.c.l.b16 %v235
    %v986 = vunpack.c.h.b16 %v235
    %v987 = vunpack.c.l.b16 %v236
    %v988 = vunpack.c.h.b16 %v236
    %v989 = vunpack.c.l.b16 %v237
    %v990 = vunpack.c.h.b16 %v237
    %v991 = vunpack.c.l.b16 %v238
    %v992 = vunpack.c.h.b16 %v238
    %v993 = vunpack.c.l.b16 %v239
    %v994 = vunpack.c.h.b16 %v239
    %v995 = vunpack.c.l.b16 %v240
    %v996 = vunpack.c.h.b16 %v240
    %v997 = vunpack.c.l.b16 %v241
    %v998 = vunpack.c.h.b16 %v241
    %v999 = vunpack.c.l.b16 %v242
    %v1000 = vunpack.c.h.b16 %v242
    %v1001 = vunpack.c.l.b16 %v243
    %v1002 = vunpack.c.h.b16 %v243
    %v1003 = vunpack.c.l.b16 %v244
    %v1004 = vunpack.c.h.b16 %v244
    %v1005 = vunpack.c.l.b16 %v245
    %v1006 = vunpack.c.h.b16 %v245
    %v1007 = vunpack.c.l.b16 %v246
    %v1008 = vunpack.c.h.b16 %v246
    %v1009 = vunpack.c.l.b16 %v247
    %v1010 = vunpack.c.h.b16 %v247
    %v1011 = vunpack.c.l.b16 %v248
    %v1012 = vunpack.c.h.b16 %v248
    %v1013 = vunpack.c.l.b16 %v249
    %v1014 = vunpack.c.h.b16 %v249
    %v1015 = vunpack.c.l.b16 %v250
    %v1016 = vunpack.c.h.b16 %v250
    %v1017 = vunpack.c.l.b16 %v251
    %v1018 = vunpack.c.h.b16 %v251
    %v1019 = vunpack.c.l.b16 %v252
    %v1020 = vunpack.c.h.b16 %v252
    %v1021 = vunpack.c.l.b16 %v253
    %v1022 = vunpack.c.h.b16 %v253
    %v1023 = vunpack.c.l.b16 %v254
    %v1024 = vunpack.c.h.b16 %v254
    %v1025 = vunpack.c.l.b16 %v255
    %v1026 = vunpack.c.h.b16 %v255
    %v1027 = vunpack.c.l.b16 %v256
    %v1028 = vunpack.c.h.b16 %v256
    %v1029 = vunpack.c.l.b16 %v257
    %v1030 = vunpack.c.h.b16 %v257
    %v1031 = vunpack.c.l.b16 %v258
    %v1032 = vunpack.c.h.b16 %v258
    %v1033 = vunpack.c.l.b16 %v259
    %v1034 = vunpack.c.h.b16 %v259
    %v1035 = vunpack.c.l.b16 %v260
    %v1036 = vunpack.c.h.b16 %v260
    %v1037 = vunpack.c.l.b16 %v261
    %v1038 = vunpack.c.h.b16 %v261
    %v1039 = vunpack.c.l.b16 %v262
    %v1040 = vunpack.c.h.b16 %v262
    %v1041 = vunpack.c.l.b16 %v263
    %v1042 = vunpack.c.h.b16 %v263
    %v1043 = vunpack.c.l.b16 %v264
    %v1044 = vunpack.c.h.b16 %v264
    %v1045 = vunpack.c.l.b16 %v265
    %v1046 = vunpack.c.h.b16 %v265
    %v1047 = vunpack.c.l.b16 %v266
    %v1048 = vunpack.c.h.b16 %v266
    %v1049 = vunpack.c.l.b16 %v267
    %v1050 = vunpack.c.h.b16 %v267
    %v1051 = vunpack.c.l.b16 %v268
    %v1052 = vunpack.c.h.b16 %v268
    %v1053 = vunpack.c.l.b16 %v269
    %v1054 = vunpack.c.h.b16 %v269
    %v1055 = vunpack.c.l.b16 %v270
    %v1056 = vunpack.c.h.b16 %v270
    %v1057 = vunpack.c.l.b16 %v271
    %v1058 = vunpack.c.h.b16 %v271
    %v1059 = vunpack.c.l.b16 %v272
    %v1060 = vunpack.c.h.b16 %v272
    %v1061 = vunpack.c.l.b16 %v273
    %v1062 = vunpack.c.h.b16 %v273
    %v1063 = vunpack.c.l.b16 %v274
    %v1064 = vunpack.c.h.b16 %v274
    %v1065 = vunpack.c.l.b16 %v275
    %v1066 = vunpack.c.h.b16 %v275
    %v1067 = vunpack.c.l.b16 %v276
    %v1068 = vunpack.c.h.b16 %v276
    %v1069 = vunpack.c.l.b16 %v277
    %v1070 = vunpack.c.h.b16 %v277
    %v1071 = vunpack.c.l.b16 %v278
    %v1072 = vunpack.c.h.b16 %v278
    %v1073 = vunpack.c.l.b16 %v279
    %v1074 = vunpack.c.h.b16 %v279
    %v1075 = vunpack.c.l.b16 %v280
    %v1076 = vunpack.c.h.b16 %v280
    %v1077 = vunpack.c.l.b16 %v281
    %v1078 = vunpack.c.h.b16 %v281
    %v1079 = vunpack.c.l.b16 %v282
    %v1080 = vunpack.c.h.b16 %v282
    %v1081 = vunpack.c.l.b16 %v283
    %v1082 = vunpack.c.h.b16 %v283
    %v1083 = vunpack.c.l.b16 %v284
    %v1084 = vunpack.c.h.b16 %v284
    %v1085 = vunpack.c.l.b16 %v285
    %v1086 = vunpack.c.h.b16 %v285
    %v1087 = vunpack.c.l.b16 %v286
    %v1088 = vunpack.c.h.b16 %v286
    %v1089 = vunpack.c.l.b16 %v287
    %v1090 = vunpack.c.h.b16 %v287
    %v1091 = vunpack.c.l.b16 %v288
    %v1092 = vunpack.c.h.b16 %v288
    %v1093 = vunpack.c.l.b16 %v289
    %v1094 = vunpack.c.h.b16 %v289
    %v1095 = vunpack.c.l.b16 %v290
    %v1096 = vunpack.c.h.b16 %v290
    %v1097 = vunpack.c.l.b16 %v291
    %v1098 = vunpack.c.h.b16 %v291
    %v1099 = vunpack.c.l.b16 %v292
    %v1100 = vunpack.c.h.b16 %v292
    %v1101 = vunpack.c.l.b16 %v293
    %v1102 = vunpack.c.h.b16 %v293
    %v1103 = vunpack.c.l.b16 %v294
    %v1104 = vunpack.c.h.b16 %v294
    %v1105 = vunpack.c.l.b16 %v295
    %v1106 = vunpack.c.h.b16 %v295
    %v1107 = vunpack.c.l.b16 %v296
    %v1108 = vunpack.c.h.b16 %v296
    %v1109 = vunpack.c.l.b16 %v297
    %v1110 = vunpack.c.h.b16 %v297
    %v1111 = vunpack.c.l.b16 %v298
    %v1112 = vunpack.c.h.b16 %v298
    %v1113 = vunpack.c.l.b16 %v299
    %v1114 = vunpack.c.h.b16 %v299
    %v1115 = vunpack.c.l.b16 %v300
    %v1116 = vunpack.c.h.b16 %v300
    %v1117 = vunpack.c.l.b16 %v301
    %v1118 = vunpack.c.h.b16 %v301
    %v1119 = vunpack.c.l.b16 %v302
    %v1120 = vunpack.c.h.b16 %v302
    %v1121 = vpack.c.b16 %v613, %v609
    %v1122 = vpack.c.b16 %v614, %v610
    %v1123 = vpack.c.b16 %v615, %v611
    %v1124 = vpack.c.b16 %v616, %v612
    %v1125 = vpack.c.b16 %v621, %v617
    %v1126 = vpack.c.b16 %v622, %v618
    %v1127 = vpack.c.b16 %v623, %v619
    %v1128 = vpack.c.b16 %v624, %v620
    %v1129 = vpack.c.b16 %v629, %v625
    %v1130 = vpack.c.b16 %v630, %v626
    %v1131 = vpack.c.b16 %v631, %v627
    %v1132 = vpack.c.b16 %v632, %v628
    %v1133 = vpack.c.b16 %v637, %v633
    %v1134 = vpack.c.b16 %v638, %v634
    %v1135 = vpack.c.b16 %v639, %v635
    %v1136 = vpack.c.b16 %v640, %v636
    %v1137 = vpack.c.b16 %v645, %v641
    %v1138 = vpack.c.b16 %v646, %v642
    %v1139 = vpack.c.b16 %v647, %v643
    %v1140 = vpack.c.b16 %v648, %v644
    %v1141 = vpack.c.b16 %v653, %v649
    %v1142 = vpack.c.b16 %v654, %v650
    %v1143 = vpack.c.b16 %v655, %v651
    %v1144 = vpack.c.b16 %v656, %v652
    %v1145 = vpack.c.b16 %v661, %v657
    %v1146 = vpack.c.b16 %v662, %v658
    %v1147 = vpack.c.b16 %v663, %v659
    %v1148 = vpack.c.b16 %v664, %v660
    %v1149 = vpack.c.b16 %v669, %v665
    %v1150 = vpack.c.b16 %v670, %v666
    %v1151 = vpack.c.b16 %v671, %v667
    %v1152 = vpack.c.b16 %v672, %v668
    %v1153 = vpack.c.b16 %v677, %v673
    %v1154 = vpack.c.b16 %v678, %v674
    %v1155 = vpack.c.b16 %v679, %v675
    %v1156 = vpack.c.b16 %v680, %v676
    %v1157 = vpack.c.b16 %v685, %v681
    %v1158 = vpack.c.b16 %v686, %v682
    %v1159 = vpack.c.b16 %v687, %v683
    %v1160 = vpack.c.b16 %v688, %v684
    %v1161 = vpack.c.b16 %v693, %v689
    %v1162 = vpack.c.b16 %v694, %v690
    %v1163 = vpack.c.b16 %v695, %v691
    %v1164 = vpack.c.b16 %v696, %v692
    %v1165 = vpack.c.b16 %v701, %v697
    %v1166 = vpack.c.b16 %v702, %v698
    %v1167 = vpack.c.b16 %v703, %v699
    %v1168 = vpack.c.b16 %v704, %v700
    %v1169 = vpack.c.b16 %v709, %v705
    %v1170 = vpack.c.b16 %v710, %v706
    %v1171 = vpack.c.b16 %v711, %v707
    %v1172 = vpack.c.b16 %v712, %v708
    %v1173 = vpack.c.b16 %v717, %v713
    %v1174 = vpack.c.b16 %v718, %v714
    %v1175 = vpack.c.b16 %v719, %v715
    %v1176 = vpack.c.b16 %v720, %v716
    %v1177 = vpack.c.b16 %v725, %v721
    %v1178 = vpack.c.b16 %v726, %v722
    %v1179 = vpack.c.b16 %v727, %v723
    %v1180 = vpack.c.b16 %v728, %v724
    %v1181 = vpack.c.b16 %v733, %v729
    %v1182 = vpack.c.b16 %v734, %v730
    %v1183 = vpack.c.b16 %v735, %v731
    %v1184 = vpack.c.b16 %v736, %v732
    %v1185 = vpack.c.b16 %v741, %v737
    %v1186 = vpack.c.b16 %v742, %v738
    %v1187 = vpack.c.b16 %v743, %v739
    %v1188 = vpack.c.b16 %v744, %v740
    %v1189 = vpack.c.b16 %v749, %v745
    %v1190 = vpack.c.b16 %v750, %v746
    %v1191 = vpack.c.b16 %v751, %v747
    %v1192 = vpack.c.b16 %v752, %v748
    %v1193 = vpack.c.b16 %v757, %v753
    %v1194 = vpack.c.b16 %v758, %v754
    %v1195 = vpack.c.b16 %v759, %v755
    %v1196 = vpack.c.b16 %v760, %v756
    %v1197 = vpack.c.b16 %v765, %v761
    %v1198 = vpack.c.b16 %v766, %v762
    %v1199 = vpack.c.b16 %v767, %v763
    %v1200 = vpack.c.b16 %v768, %v764
    %v1201 = vpack.c.b16 %v773, %v769
    %v1202 = vpack.c.b16 %v774, %v770
    %v1203 = vpack.c.b16 %v775, %v771
    %v1204 = vpack.c.b16 %v776, %v772
    %v1205 = vpack.c.b16 %v781, %v777
    %v1206 = vpack.c.b16 %v782, %v778
    %v1207 = vpack.c.b16 %v783, %v779
    %v1208 = vpack.c.b16 %v784, %v780
    %v1209 = vpack.c.b16 %v789, %v785
    %v1210 = vpack.c.b16 %v790, %v786
    %v1211 = vpack.c.b16 %v791, %v787
    %v1212 = vpack.c.b16 %v792, %v788
    %v1213 = vpack.c.b16 %v797, %v793
    %v1214 = vpack.c.b16 %v798, %v794
    %v1215 = vpack.c.b16 %v799, %v795
    %v1216 = vpack.c.b16 %v800, %v796
    %v1217 = vpack.c.b16 %v805, %v801
    %v1218 = vpack.c.b16 %v806, %v802
    %v1219 = vpack.c.b16 %v807, %v803
    %v1220 = vpack.c.b16 %v808, %v804
    %v1221 = vpack.c.b16 %v813, %v809
    %v1222 = vpack.c.b16 %v814, %v810
    %v1223 = vpack.c.b16 %v815, %v811
    %v1224 = vpack.c.b16 %v816, %v812
    %v1225 = vpack.c.b16 %v821, %v817
    %v1226 = vpack.c.b16 %v822, %v818
    %v1227 = vpack.c.b16 %v823, %v819
    %v1228 = vpack.c.b16 %v824, %v820
    %v1229 = vpack.c.b16 %v829, %v825
    %v1230 = vpack.c.b16 %v830, %v826
    %v1231 = vpack.c.b16 %v831, %v827
    %v1232 = vpack.c.b16 %v832, %v828
    %v1233 = vpack.c.b16 %v837, %v833
    %v1234 = vpack.c.b16 %v838, %v834
    %v1235 = vpack.c.b16 %v839, %v835
    %v1236 = vpack.c.b16 %v840, %v836
    %v1237 = vpack.c.b16 %v845, %v841
    %v1238 = vpack.c.b16 %v846, %v842
    %v1239 = vpack.c.b16 %v847, %v843
    %v1240 = vpack.c.b16 %v848, %v844
    %v1241 = vpack.c.b16 %v853, %v849
    %v1242 = vpack.c.b16 %v854, %v850
    %v1243 = vpack.c.b16 %v855, %v851
    %v1244 = vpack.c.b16 %v856, %v852
    %v1245 = vpack.c.b16 %v861, %v857
    %v1246 = vpack.c.b16 %v862, %v858
    %v1247 = vpack.c.b16 %v863, %v859
    %v1248 = vpack.c.b16 %v864, %v860
    %v1249 = vpack.c.b16 %v869, %v865
    %v1250 = vpack.c.b16 %v870, %v866
    %v1251 = vpack.c.b16 %v871, %v867
    %v1252 = vpack.c.b16 %v872, %v868
    %v1253 = vpack.c.b16 %v877, %v873
    %v1254 = vpack.c.b16 %v878, %v874
    %v1255 = vpack.c.b16 %v879, %v875
    %v1256 = vpack.c.b16 %v880, %v876
    %v1257 = vpack.c.b16 %v885, %v881
    %v1258 = vpack.c.b16 %v886, %v882
    %v1259 = vpack.c.b16 %v887, %v883
    %v1260 = vpack.c.b16 %v888, %v884
    %v1261 = vpack.c.b16 %v893, %v889
    %v1262 = vpack.c.b16 %v894, %v890
    %v1263 = vpack.c.b16 %v895, %v891
    %v1264 = vpack.c.b16 %v896, %v892
    %v1265 = vpack.c.b16 %v901, %v897
    %v1266 = vpack.c.b16 %v902, %v898
    %v1267 = vpack.c.b16 %v903, %v899
    %v1268 = vpack.c.b16 %v904, %v900
    %v1269 = vpack.c.b16 %v909, %v905
    %v1270 = vpack.c.b16 %v910, %v906
    %v1271 = vpack.c.b16 %v911, %v907
    %v1272 = vpack.c.b16 %v912, %v908
    %v1273 = vpack.c.b16 %v917, %v913
    %v1274 = vpack.c.b16 %v918, %v914
    %v1275 = vpack.c.b16 %v919, %v915
    %v1276 = vpack.c.b16 %v920, %v916
    %v1277 = vpack.c.b16 %v925, %v921
    %v1278 = vpack.c.b16 %v926, %v922
    %v1279 = vpack.c.b16 %v927, %v923
    %v1280 = vpack.c.b16 %v928, %v924
    %v1281 = vpack.c.b16 %v933, %v929
    %v1282 = vpack.c.b16 %v934, %v930
    %v1283 = vpack.c.b16 %v935, %v931
    %v1284 = vpack.c.b16 %v936, %v932
    %v1285 = vpack.c.b16 %v941, %v937
    %v1286 = vpack.c.b16 %v942, %v938
    %v1287 = vpack.c.b16 %v943, %v939
    %v1288 = vpack.c.b16 %v944, %v940
    %v1289 = vpack.c.b16 %v949, %v945
    %v1290 = vpack.c.b16 %v950, %v946
    %v1291 = vpack.c.b16 %v951, %v947
    %v1292 = vpack.c.b16 %v952, %v948
    %v1293 = vpack.c.b16 %v957, %v953
    %v1294 = vpack.c.b16 %v958, %v954
    %v1295 = vpack.c.b16 %v959, %v955
    %v1296 = vpack.c.b16 %v960, %v956
    %v1297 = vpack.c.b16 %v965, %v961
    %v1298 = vpack.c.b16 %v966, %v962
    %v1299 = vpack.c.b16 %v967, %v963
    %v1300 = vpack.c.b16 %v968, %v964
    %v1301 = vpack.c.b16 %v973, %v969
    %v1302 = vpack.c.b16 %v974, %v970
    %v1303 = vpack.c.b16 %v975, %v971
    %v1304 = vpack.c.b16 %v976, %v972
    %v1305 = vpack.c.b16 %v981, %v977
    %v1306 = vpack.c.b16 %v982, %v978
    %v1307 = vpack.c.b16 %v983, %v979
    %v1308 = vpack.c.b16 %v984, %v980
    %v1309 = vpack.c.b16 %v989, %v985
    %v1310 = vpack.c.b16 %v990, %v986
    %v1311 = vpack.c.b16 %v991, %v987
    %v1312 = vpack.c.b16 %v992, %v988
    %v1313 = vpack.c.b16 %v997, %v993
    %v1314 = vpack.c.b16 %v998, %v994
    %v1315 = vpack.c.b16 %v999, %v995
    %v1316 = vpack.c.b16 %v1000, %v996
    %v1317 = vpack.c.b16 %v1005, %v1001
    %v1318 = vpack.c.b16 %v1006, %v1002
    %v1319 = vpack.c.b16 %v1007, %v1003
    %v1320 = vpack.c.b16 %v1008, %v1004
    %v1321 = vpack.c.b16 %v1013, %v1009
    %v1322 = vpack.c.b16 %v1014, %v1010
    %v1323 = vpack.c.b16 %v1015, %v1011
    %v1324 = vpack.c.b16 %v1016, %v1012
    %v1325 = vpack.c.b16 %v1021, %v1017
    %v1326 = vpack.c.b16 %v1022, %v1018
    %v1327 = vpack.c.b16 %v1023, %v1019
    %v1328 = vpack.c.b16 %v1024, %v1020
    %v1329 = vpack.c.b16 %v1029, %v1025
    %v1330 = vpack.c.b16 %v1030, %v1026
    %v1331 = vpack.c.b16 %v1031, %v1027
    %v1332 = vpack.c.b16 %v1032, %v1028
    %v1333 = vpack.c.b16 %v1037, %v1033
    %v1334 = vpack.c.b16 %v1038, %v1034
    %v1335 = vpack.c.b16 %v1039, %v1035
    %v1336 = vpack.c.b16 %v1040, %v1036
    %v1337 = vpack.c.b16 %v1045, %v1041
    %v1338 = vpack.c.b16 %v1046, %v1042
    %v1339 = vpack.c.b16 %v1047, %v1043
    %v1340 = vpack.c.b16 %v1048, %v1044
    %v1341 = vpack.c.b16 %v1053, %v1049
    %v1342 = vpack.c.b16 %v1054, %v1050
    %v1343 = vpack.c.b16 %v1055, %v1051
    %v1344 = vpack.c.b16 %v1056, %v1052
    %v1345 = vpack.c.b16 %v1061, %v1057
    %v1346 = vpack.c.b16 %v1062, %v1058
    %v1347 = vpack.c.b16 %v1063, %v1059
    %v1348 = vpack.c.b16 %v1064, %v1060
    %v1349 = vpack.c.b16 %v1069, %v1065
    %v1350 = vpack.c.b16 %v1070, %v1066
    %v1351 = vpack.c.b16 %v1071, %v1067
    %v1352 = vpack.c.b16 %v1072, %v1068
    %v1353 = vpack.c.b16 %v1077, %v1073
    %v1354 = vpack.c.b16 %v1078, %v1074
    %v1355 = vpack.c.b16 %v1079, %v1075
    %v1356 = vpack.c.b16 %v1080, %v1076
    %v1357 = vpack.c.b16 %v1085, %v1081
    %v1358 = vpack.c.b16 %v1086, %v1082
    %v1359 = vpack.c.b16 %v1087, %v1083
    %v1360 = vpack.c.b16 %v1088, %v1084
    %v1361 = vpack.c.b16 %v1093, %v1089
    %v1362 = vpack.c.b16 %v1094, %v1090
    %v1363 = vpack.c.b16 %v1095, %v1091
    %v1364 = vpack.c.b16 %v1096, %v1092
    %v1365 = vpack.c.b16 %v1101, %v1097
    %v1366 = vpack.c.b16 %v1102, %v1098
    %v1367 = vpack.c.b16 %v1103, %v1099
    %v1368 = vpack.c.b16 %v1104, %v1100
    %v1369 = vpack.c.b16 %v1109, %v1105
    %v1370 = vpack.c.b16 %v1110, %v1106
    %v1371 = vpack.c.b16 %v1111, %v1107
    %v1372 = vpack.c.b16 %v1112, %v1108
    %v1373 = vpack.c.b16 %v1117, %v1113
    %v1374 = vpack.c.b16 %v1118, %v1114
    %v1375 = vpack.c.b16 %v1119, %v1115
    %v1376 = vpack.c.b16 %v1120, %v1116
    %1633 = vmatprep.subr.bf16.mxu0 %v1150
    %1634 = vmatpush1.bf16.msra.mxu0 %v1149
    %1635 = vmatprep.subr.bf16.mxu0 %v1146
    %1636 = vmatpush1.bf16.msra.mxu0 %v1145
    %1637 = vmatprep.subr.bf16.mxu0 %v1142
    %1638 = vmatpush1.bf16.msra.mxu0 %v1141
    %1639 = vmatprep.subr.bf16.mxu0 %v1138
    %1640 = vmatpush1.bf16.msra.mxu0 %v1137
    %1641 = vmatprep.subr.bf16.mxu0 %v1134
    %1642 = vmatpush1.bf16.msra.mxu0 %v1133
    %1643 = vmatprep.subr.bf16.mxu0 %v1130
    %1644 = vmatpush1.bf16.msra.mxu0 %v1129
    %1645 = vmatprep.subr.bf16.mxu0 %v1126
    %1646 = vmatpush1.bf16.msra.mxu0 %v1125
    %1647 = vmatprep.subr.bf16.mxu0 %v1122
    %1648 = vmatpush1.bf16.msra.mxu0 %v1121
    %1649 = vmatprep.subr.bf16.mxu0 %v1182
    %1650 = vmatpush2.bf16.msra.mxu0 %v1181
    %1651 = vmatprep.subr.bf16.mxu0 %v1178
    %1652 = vmatpush2.bf16.msra.mxu0 %v1177
    %1653 = vmatprep.subr.bf16.mxu0 %v1174
    %1654 = vmatpush2.bf16.msra.mxu0 %v1173
    %1655 = vmatprep.subr.bf16.mxu0 %v1170
    %1656 = vmatpush2.bf16.msra.mxu0 %v1169
    %1657 = vmatprep.subr.bf16.mxu0 %v1166
    %1658 = vmatpush2.bf16.msra.mxu0 %v1165
    %1659 = vmatprep.subr.bf16.mxu0 %v1162
    %1660 = vmatpush2.bf16.msra.mxu0 %v1161
    %1661 = vmatprep.subr.bf16.mxu0 %v1158
    %1662 = vmatpush2.bf16.msra.mxu0 %v1157
    %1663 = vmatprep.subr.bf16.mxu0 %v1154
    %1664 = vmatpush2.bf16.msra.mxu0 %v1153
    %1665 = vmatprep.mubr.bf16.mxu0 %v338
    %1666 = vmatmul.mubr.bf16.gmra.mxu0 %v337
    %v1667 = vpop.f32.mrf.mxu0
    %v1668 = vadd.f32 %v308, %v1667
    %v1669 = vpop.f32.mrf.mxu0
    %v1670 = vadd.f32 %v312, %v1669
    %v1671 = vpop.f32.mrf.mxu0
    %v1672 = vpop.f32.mrf.mxu0
    %1673 = vdwg.mxu0
    %1674 = vmatprep.subr.bf16.mxu0 %v1214
    %1675 = vmatpush1.bf16.msra.mxu0 %v1213
    %1676 = vmatprep.subr.bf16.mxu0 %v1210
    %1677 = vmatpush1.bf16.msra.mxu0 %v1209
    %1678 = vmatprep.subr.bf16.mxu0 %v1206
    %1679 = vmatpush1.bf16.msra.mxu0 %v1205
    %1680 = vmatprep.subr.bf16.mxu0 %v1202
    %1681 = vmatpush1.bf16.msra.mxu0 %v1201
    %1682 = vmatprep.subr.bf16.mxu0 %v1198
    %1683 = vmatpush1.bf16.msra.mxu0 %v1197
    %1684 = vmatprep.subr.bf16.mxu0 %v1194
    %1685 = vmatpush1.bf16.msra.mxu0 %v1193
    %1686 = vmatprep.subr.bf16.mxu0 %v1190
    %1687 = vmatpush1.bf16.msra.mxu0 %v1189
    %1688 = vmatprep.subr.bf16.mxu0 %v1186
    %1689 = vmatpush1.bf16.msra.mxu0 %v1185
    %1690 = vmatprep.subr.bf16.mxu0 %v1246
    %1691 = vmatpush2.bf16.msra.mxu0 %v1245
    %1692 = vmatprep.subr.bf16.mxu0 %v1242
    %1693 = vmatpush2.bf16.msra.mxu0 %v1241
    %1694 = vmatprep.subr.bf16.mxu0 %v1238
    %1695 = vmatpush2.bf16.msra.mxu0 %v1237
    %1696 = vmatprep.subr.bf16.mxu0 %v1234
    %1697 = vmatpush2.bf16.msra.mxu0 %v1233
    %1698 = vmatprep.subr.bf16.mxu0 %v1230
    %1699 = vmatpush2.bf16.msra.mxu0 %v1229
    %1700 = vmatprep.subr.bf16.mxu0 %v1226
    %1701 = vmatpush2.bf16.msra.mxu0 %v1225
    %1702 = vmatprep.subr.bf16.mxu0 %v1222
    %1703 = vmatpush2.bf16.msra.mxu0 %v1221
    %1704 = vmatprep.subr.bf16.mxu0 %v1218
    %1705 = vmatpush2.bf16.msra.mxu0 %v1217
    %1706 = vmatprep.mubr.bf16.mxu0 %v340
    %1707 = vmatmul.mubr.bf16.gmra.mxu0 %v339
    %v1708 = vpop.f32.mrf.mxu0
    %v1709 = vadd.f32 %v1668, %v1708
    %v1710 = vpop.f32.mrf.mxu0
    %v1711 = vadd.f32 %v1670, %v1710
    %v1712 = vpop.f32.mrf.mxu0
    %v1713 = vpop.f32.mrf.mxu0
    %1714 = vdwg.mxu0
    %1715 = vmatprep.subr.bf16.mxu0 %v1278
    %1716 = vmatpush1.bf16.msra.mxu0 %v1277
    %1717 = vmatprep.subr.bf16.mxu0 %v1274
    %1718 = vmatpush1.bf16.msra.mxu0 %v1273
    %1719 = vmatprep.subr.bf16.mxu0 %v1270
    %1720 = vmatpush1.bf16.msra.mxu0 %v1269
    %1721 = vmatprep.subr.bf16.mxu0 %v1266
    %1722 = vmatpush1.bf16.msra.mxu0 %v1265
    %1723 = vmatprep.subr.bf16.mxu0 %v1262
    %1724 = vmatpush1.bf16.msra.mxu0 %v1261
    %1725 = vmatprep.subr.bf16.mxu0 %v1258
    %1726 = vmatpush1.bf16.msra.mxu0 %v1257
    %1727 = vmatprep.subr.bf16.mxu0 %v1254
    %1728 = vmatpush1.bf16.msra.mxu0 %v1253
    %1729 = vmatprep.subr.bf16.mxu0 %v1250
    %1730 = vmatpush1.bf16.msra.mxu0 %v1249
    %1731 = vmatprep.subr.bf16.mxu0 %v1310
    %1732 = vmatpush2.bf16.msra.mxu0 %v1309
    %1733 = vmatprep.subr.bf16.mxu0 %v1306
    %1734 = vmatpush2.bf16.msra.mxu0 %v1305
    %1735 = vmatprep.subr.bf16.mxu0 %v1302
    %1736 = vmatpush2.bf16.msra.mxu0 %v1301
    %1737 = vmatprep.subr.bf16.mxu0 %v1298
    %1738 = vmatpush2.bf16.msra.mxu0 %v1297
    %1739 = vmatprep.subr.bf16.mxu0 %v1294
    %1740 = vmatpush2.bf16.msra.mxu0 %v1293
    %1741 = vmatprep.subr.bf16.mxu0 %v1290
    %1742 = vmatpush2.bf16.msra.mxu0 %v1289
    %1743 = vmatprep.subr.bf16.mxu0 %v1286
    %1744 = vmatpush2.bf16.msra.mxu0 %v1285
    %1745 = vmatprep.subr.bf16.mxu0 %v1282
    %1746 = vmatpush2.bf16.msra.mxu0 %v1281
    %1747 = vmatprep.mubr.bf16.mxu0 %v342
    %1748 = vmatmul.mubr.bf16.gmra.mxu0 %v341
    %v1749 = vpop.f32.mrf.mxu0
    %v1750 = vadd.f32 %v1709, %v1749
    %v1751 = vpop.f32.mrf.mxu0
    %v1752 = vadd.f32 %v1711, %v1751
    %v1753 = vpop.f32.mrf.mxu0
    %v1754 = vpop.f32.mrf.mxu0
    %1755 = vdwg.mxu0
    %1756 = vmatprep.subr.bf16.mxu0 %v1342
    %1757 = vmatpush1.bf16.msra.mxu0 %v1341
    %1758 = vmatprep.subr.bf16.mxu0 %v1338
    %1759 = vmatpush1.bf16.msra.mxu0 %v1337
    %1760 = vmatprep.subr.bf16.mxu0 %v1334
    %1761 = vmatpush1.bf16.msra.mxu0 %v1333
    %1762 = vmatprep.subr.bf16.mxu0 %v1330
    %1763 = vmatpush1.bf16.msra.mxu0 %v1329
    %1764 = vmatprep.subr.bf16.mxu0 %v1326
    %1765 = vmatpush1.bf16.msra.mxu0 %v1325
    %1766 = vmatprep.subr.bf16.mxu0 %v1322
    %1767 = vmatpush1.bf16.msra.mxu0 %v1321
    %1768 = vmatprep.subr.bf16.mxu0 %v1318
    %1769 = vmatpush1.bf16.msra.mxu0 %v1317
    %1770 = vmatprep.subr.bf16.mxu0 %v1314
    %1771 = vmatpush1.bf16.msra.mxu0 %v1313
    %1772 = vmatprep.subr.bf16.mxu0 %v1374
    %1773 = vmatpush2.bf16.msra.mxu0 %v1373
    %1774 = vmatprep.subr.bf16.mxu0 %v1370
    %1775 = vmatpush2.bf16.msra.mxu0 %v1369
    %1776 = vmatprep.subr.bf16.mxu0 %v1366
    %1777 = vmatpush2.bf16.msra.mxu0 %v1365
    %1778 = vmatprep.subr.bf16.mxu0 %v1362
    %1779 = vmatpush2.bf16.msra.mxu0 %v1361
    %1780 = vmatprep.subr.bf16.mxu0 %v1358
    %1781 = vmatpush2.bf16.msra.mxu0 %v1357
    %1782 = vmatprep.subr.bf16.mxu0 %v1354
    %1783 = vmatpush2.bf16.msra.mxu0 %v1353
    %1784 = vmatprep.subr.bf16.mxu0 %v1350
    %1785 = vmatpush2.bf16.msra.mxu0 %v1349
    %1786 = vmatprep.subr.bf16.mxu0 %v1346
    %1787 = vmatpush2.bf16.msra.mxu0 %v1345
    %1788 = vmatprep.mubr.bf16.mxu0 %v344
    %1789 = vmatmul.mubr.bf16.gmra.mxu0 %v343
    %v1790 = vpop.f32.mrf.mxu0
    %v1791 = vadd.f32 %v1750, %v1790
    %v1792 = vpop.f32.mrf.mxu0
    %v1793 = vadd.f32 %v1752, %v1792
    %v1794 = vpop.f32.mrf.mxu0
    %v1795 = vpop.f32.mrf.mxu0
    %1796 = vdwg.mxu0
    %1797 = vmatprep.subr.bf16.mxu0 %v1152
    %1798 = vmatpush1.bf16.msra.mxu0 %v1151
    %1799 = vmatprep.subr.bf16.mxu0 %v1148
    %1800 = vmatpush1.bf16.msra.mxu0 %v1147
    %1801 = vmatprep.subr.bf16.mxu0 %v1144
    %1802 = vmatpush1.bf16.msra.mxu0 %v1143
    %1803 = vmatprep.subr.bf16.mxu0 %v1140
    %1804 = vmatpush1.bf16.msra.mxu0 %v1139
    %1805 = vmatprep.subr.bf16.mxu0 %v1136
    %1806 = vmatpush1.bf16.msra.mxu0 %v1135
    %1807 = vmatprep.subr.bf16.mxu0 %v1132
    %1808 = vmatpush1.bf16.msra.mxu0 %v1131
    %1809 = vmatprep.subr.bf16.mxu0 %v1128
    %1810 = vmatpush1.bf16.msra.mxu0 %v1127
    %1811 = vmatprep.subr.bf16.mxu0 %v1124
    %1812 = vmatpush1.bf16.msra.mxu0 %v1123
    %1813 = vmatprep.subr.bf16.mxu0 %v1184
    %1814 = vmatpush2.bf16.msra.mxu0 %v1183
    %1815 = vmatprep.subr.bf16.mxu0 %v1180
    %1816 = vmatpush2.bf16.msra.mxu0 %v1179
    %1817 = vmatprep.subr.bf16.mxu0 %v1176
    %1818 = vmatpush2.bf16.msra.mxu0 %v1175
    %1819 = vmatprep.subr.bf16.mxu0 %v1172
    %1820 = vmatpush2.bf16.msra.mxu0 %v1171
    %1821 = vmatprep.subr.bf16.mxu0 %v1168
    %1822 = vmatpush2.bf16.msra.mxu0 %v1167
    %1823 = vmatprep.subr.bf16.mxu0 %v1164
    %1824 = vmatpush2.bf16.msra.mxu0 %v1163
    %1825 = vmatprep.subr.bf16.mxu0 %v1160
    %1826 = vmatpush2.bf16.msra.mxu0 %v1159
    %1827 = vmatprep.subr.bf16.mxu0 %v1156
    %1828 = vmatpush2.bf16.msra.mxu0 %v1155
    %1829 = vmatprep.mubr.bf16.mxu0 %v338
    %1830 = vmatmul.mubr.bf16.gmra.mxu0 %v337
    %v1831 = vpop.f32.mrf.mxu0
    %v1832 = vadd.f32 %v316, %v1831
    %v1833 = vpop.f32.mrf.mxu0
    %v1834 = vadd.f32 %v320, %v1833
    %v1835 = vpop.f32.mrf.mxu0
    %v1836 = vpop.f32.mrf.mxu0
    %1837 = vdwg.mxu0
    %1838 = vmatprep.subr.bf16.mxu0 %v1216
    %1839 = vmatpush1.bf16.msra.mxu0 %v1215
    %1840 = vmatprep.subr.bf16.mxu0 %v1212
    %1841 = vmatpush1.bf16.msra.mxu0 %v1211
    %1842 = vmatprep.subr.bf16.mxu0 %v1208
    %1843 = vmatpush1.bf16.msra.mxu0 %v1207
    %1844 = vmatprep.subr.bf16.mxu0 %v1204
    %1845 = vmatpush1.bf16.msra.mxu0 %v1203
    %1846 = vmatprep.subr.bf16.mxu0 %v1200
    %1847 = vmatpush1.bf16.msra.mxu0 %v1199
    %1848 = vmatprep.subr.bf16.mxu0 %v1196
    %1849 = vmatpush1.bf16.msra.mxu0 %v1195
    %1850 = vmatprep.subr.bf16.mxu0 %v1192
    %1851 = vmatpush1.bf16.msra.mxu0 %v1191
    %1852 = vmatprep.subr.bf16.mxu0 %v1188
    %1853 = vmatpush1.bf16.msra.mxu0 %v1187
    %1854 = vmatprep.subr.bf16.mxu0 %v1248
    %1855 = vmatpush2.bf16.msra.mxu0 %v1247
    %1856 = vmatprep.subr.bf16.mxu0 %v1244
    %1857 = vmatpush2.bf16.msra.mxu0 %v1243
    %1858 = vmatprep.subr.bf16.mxu0 %v1240
    %1859 = vmatpush2.bf16.msra.mxu0 %v1239
    %1860 = vmatprep.subr.bf16.mxu0 %v1236
    %1861 = vmatpush2.bf16.msra.mxu0 %v1235
    %1862 = vmatprep.subr.bf16.mxu0 %v1232
    %1863 = vmatpush2.bf16.msra.mxu0 %v1231
    %1864 = vmatprep.subr.bf16.mxu0 %v1228
    %1865 = vmatpush2.bf16.msra.mxu0 %v1227
    %1866 = vmatprep.subr.bf16.mxu0 %v1224
    %1867 = vmatpush2.bf16.msra.mxu0 %v1223
    %1868 = vmatprep.subr.bf16.mxu0 %v1220
    %1869 = vmatpush2.bf16.msra.mxu0 %v1219
    %1870 = vmatprep.mubr.bf16.mxu0 %v340
    %1871 = vmatmul.mubr.bf16.gmra.mxu0 %v339
    %v1872 = vpop.f32.mrf.mxu0
    %v1873 = vadd.f32 %v1832, %v1872
    %v1874 = vpop.f32.mrf.mxu0
    %v1875 = vadd.f32 %v1834, %v1874
    %v1876 = vpop.f32.mrf.mxu0
    %v1877 = vpop.f32.mrf.mxu0
    %1878 = vdwg.mxu0
    %1879 = vmatprep.subr.bf16.mxu0 %v1280
    %1880 = vmatpush1.bf16.msra.mxu0 %v1279
    %1881 = vmatprep.subr.bf16.mxu0 %v1276
    %1882 = vmatpush1.bf16.msra.mxu0 %v1275
    %1883 = vmatprep.subr.bf16.mxu0 %v1272
    %1884 = vmatpush1.bf16.msra.mxu0 %v1271
    %1885 = vmatprep.subr.bf16.mxu0 %v1268
    %1886 = vmatpush1.bf16.msra.mxu0 %v1267
    %1887 = vmatprep.subr.bf16.mxu0 %v1264
    %1888 = vmatpush1.bf16.msra.mxu0 %v1263
    %1889 = vmatprep.subr.bf16.mxu0 %v1260
    %1890 = vmatpush1.bf16.msra.mxu0 %v1259
    %1891 = vmatprep.subr.bf16.mxu0 %v1256
    %1892 = vmatpush1.bf16.msra.mxu0 %v1255
    %1893 = vmatprep.subr.bf16.mxu0 %v1252
    %1894 = vmatpush1.bf16.msra.mxu0 %v1251
    %1895 = vmatprep.subr.bf16.mxu0 %v1312
    %1896 = vmatpush2.bf16.msra.mxu0 %v1311
    %1897 = vmatprep.subr.bf16.mxu0 %v1308
    %1898 = vmatpush2.bf16.msra.mxu0 %v1307
    %1899 = vmatprep.subr.bf16.mxu0 %v1304
    %1900 = vmatpush2.bf16.msra.mxu0 %v1303
    %1901 = vmatprep.subr.bf16.mxu0 %v1300
    %1902 = vmatpush2.bf16.msra.mxu0 %v1299
    %1903 = vmatprep.subr.bf16.mxu0 %v1296
    %1904 = vmatpush2.bf16.msra.mxu0 %v1295
    %1905 = vmatprep.subr.bf16.mxu0 %v1292
    %1906 = vmatpush2.bf16.msra.mxu0 %v1291
    %1907 = vmatprep.subr.bf16.mxu0 %v1288
    %1908 = vmatpush2.bf16.msra.mxu0 %v1287
    %1909 = vmatprep.subr.bf16.mxu0 %v1284
    %1910 = vmatpush2.bf16.msra.mxu0 %v1283
    %1911 = vmatprep.mubr.bf16.mxu0 %v342
    %1912 = vmatmul.mubr.bf16.gmra.mxu0 %v341
    %v1913 = vpop.f32.mrf.mxu0
    %v1914 = vadd.f32 %v1873, %v1913
    %v1915 = vpop.f32.mrf.mxu0
    %v1916 = vadd.f32 %v1875, %v1915
    %v1917 = vpop.f32.mrf.mxu0
    %v1918 = vpop.f32.mrf.mxu0
    %1919 = vdwg.mxu0
    %1920 = vmatprep.subr.bf16.mxu0 %v1344
    %1921 = vmatpush1.bf16.msra.mxu0 %v1343
    %1922 = vmatprep.subr.bf16.mxu0 %v1340
    %1923 = vmatpush1.bf16.msra.mxu0 %v1339
    %1924 = vmatprep.subr.bf16.mxu0 %v1336
    %1925 = vmatpush1.bf16.msra.mxu0 %v1335
    %1926 = vmatprep.subr.bf16.mxu0 %v1332
    %1927 = vmatpush1.bf16.msra.mxu0 %v1331
    %1928 = vmatprep.subr.bf16.mxu0 %v1328
    %1929 = vmatpush1.bf16.msra.mxu0 %v1327
    %1930 = vmatprep.subr.bf16.mxu0 %v1324
    %1931 = vmatpush1.bf16.msra.mxu0 %v1323
    %1932 = vmatprep.subr.bf16.mxu0 %v1320
    %1933 = vmatpush1.bf16.msra.mxu0 %v1319
    %1934 = vmatprep.subr.bf16.mxu0 %v1316
    %1935 = vmatpush1.bf16.msra.mxu0 %v1315
    %1936 = vmatprep.subr.bf16.mxu0 %v1376
    %1937 = vmatpush2.bf16.msra.mxu0 %v1375
    %1938 = vmatprep.subr.bf16.mxu0 %v1372
    %1939 = vmatpush2.bf16.msra.mxu0 %v1371
    %1940 = vmatprep.subr.bf16.mxu0 %v1368
    %1941 = vmatpush2.bf16.msra.mxu0 %v1367
    %1942 = vmatprep.subr.bf16.mxu0 %v1364
    %1943 = vmatpush2.bf16.msra.mxu0 %v1363
    %1944 = vmatprep.subr.bf16.mxu0 %v1360
    %1945 = vmatpush2.bf16.msra.mxu0 %v1359
    %1946 = vmatprep.subr.bf16.mxu0 %v1356
    %1947 = vmatpush2.bf16.msra.mxu0 %v1355
    %1948 = vmatprep.subr.bf16.mxu0 %v1352
    %1949 = vmatpush2.bf16.msra.mxu0 %v1351
    %1950 = vmatprep.subr.bf16.mxu0 %v1348
    %1951 = vmatpush2.bf16.msra.mxu0 %v1347
    %1952 = vmatprep.mubr.bf16.mxu0 %v344
    %1953 = vmatmul.mubr.bf16.gmra.mxu0 %v343
    %v1954 = vpop.f32.mrf.mxu0
    %v1955 = vadd.f32 %v1914, %v1954
    %v1956 = vpop.f32.mrf.mxu0
    %v1957 = vadd.f32 %v1916, %v1956
    %v1958 = vpop.f32.mrf.mxu0
    %v1959 = vpop.f32.mrf.mxu0
    %1960 = vdwg.mxu0
    %v1961 = vld [vmem:[%s3] ss:$4 sm:$0xf]
    %v1963 = vlaneseq
    %v1964 = vshrl.u32 %v1963, 7
    %v1965 = vsub.s32 0, %v1964
    %v1966 = vrot.slane %v1961, %v1965
    %v1967 = vlaneseq
    %v1968 = vshrl.u32 %v1967, 7
    %v1969 = vsub.s32 1, %v1968
    %v1970 = vrot.slane %v1961, %v1969
    %v1971 = vlaneseq
    %v1972 = vshrl.u32 %v1971, 7
    %v1973 = vsub.s32 2, %v1972
    %v1974 = vrot.slane %v1961, %v1973
    %v1975 = vlaneseq
    %v1976 = vshrl.u32 %v1975, 7
    %v1977 = vsub.s32 3, %v1976
    %v1978 = vrot.slane %v1961, %v1977
    %v1983 = vmul.f32 %v1791, %v1966
    %v1984 = vmul.f32 %v1793, %v1970
    %v1985 = vmul.f32 %v1955, %v1974
    %v1986 = vmul.f32 %v1957, %v1978
    %v1987 = vadd.f32 %v1983, %v1984
    %v1988 = vadd.f32 %v1987, %v1985
    %v1989 = vadd.f32 %v1988, %v1986
    %1990 = vadd.xlane.f32.xlu0 %v1989
    %v1991 = vpop.xlane.xlu0 %1990
    %s1992 = scalar_lea.vmem %s3, 1
    %v1993 = vld [vmem:[%s1992] ss:$4 sm:$0xf]
    %v1995 = vlaneseq
    %v1996 = vshrl.u32 %v1995, 7
    %v1997 = vsub.s32 0, %v1996
    %v1998 = vrot.slane %v1993, %v1997
    %v1999 = vlaneseq
    %v2000 = vshrl.u32 %v1999, 7
    %v2001 = vsub.s32 1, %v2000
    %v2002 = vrot.slane %v1993, %v2001
    %v2003 = vlaneseq
    %v2004 = vshrl.u32 %v2003, 7
    %v2005 = vsub.s32 2, %v2004
    %v2006 = vrot.slane %v1993, %v2005
    %v2007 = vlaneseq
    %v2008 = vshrl.u32 %v2007, 7
    %v2009 = vsub.s32 3, %v2008
    %v2010 = vrot.slane %v1993, %v2009
    %v2015 = vmul.f32 %v1791, %v1998
    %v2016 = vmul.f32 %v1793, %v2002
    %v2017 = vmul.f32 %v1955, %v2006
    %v2018 = vmul.f32 %v1957, %v2010
    %v2019 = vadd.f32 %v2015, %v2016
    %v2020 = vadd.f32 %v2019, %v2017
    %v2021 = vadd.f32 %v2020, %v2018
    %2022 = vadd.xlane.f32.xlu0 %v2021
    %v2023 = vpop.xlane.xlu0 %2022
    %s2024 = scalar_lea.vmem %s3, 2
    %v2025 = vld [vmem:[%s2024] ss:$4 sm:$0xf]
    %v2027 = vlaneseq
    %v2028 = vshrl.u32 %v2027, 7
    %v2029 = vsub.s32 0, %v2028
    %v2030 = vrot.slane %v2025, %v2029
    %v2031 = vlaneseq
    %v2032 = vshrl.u32 %v2031, 7
    %v2033 = vsub.s32 1, %v2032
    %v2034 = vrot.slane %v2025, %v2033
    %v2035 = vlaneseq
    %v2036 = vshrl.u32 %v2035, 7
    %v2037 = vsub.s32 2, %v2036
    %v2038 = vrot.slane %v2025, %v2037
    %v2039 = vlaneseq
    %v2040 = vshrl.u32 %v2039, 7
    %v2041 = vsub.s32 3, %v2040
    %v2042 = vrot.slane %v2025, %v2041
    %v2047 = vmul.f32 %v1791, %v2030
    %v2048 = vmul.f32 %v1793, %v2034
    %v2049 = vmul.f32 %v1955, %v2038
    %v2050 = vmul.f32 %v1957, %v2042
    %v2051 = vadd.f32 %v2047, %v2048
    %v2052 = vadd.f32 %v2051, %v2049
    %v2053 = vadd.f32 %v2052, %v2050
    %2054 = vadd.xlane.f32.xlu0 %v2053
    %v2055 = vpop.xlane.xlu0 %2054
    %s2056 = scalar_lea.vmem %s3, 3
    %v2057 = vld [vmem:[%s2056] ss:$4 sm:$0xf]
    %v2059 = vlaneseq
    %v2060 = vshrl.u32 %v2059, 7
    %v2061 = vsub.s32 0, %v2060
    %v2062 = vrot.slane %v2057, %v2061
    %v2063 = vlaneseq
    %v2064 = vshrl.u32 %v2063, 7
    %v2065 = vsub.s32 1, %v2064
    %v2066 = vrot.slane %v2057, %v2065
    %v2067 = vlaneseq
    %v2068 = vshrl.u32 %v2067, 7
    %v2069 = vsub.s32 2, %v2068
    %v2070 = vrot.slane %v2057, %v2069
    %v2071 = vlaneseq
    %v2072 = vshrl.u32 %v2071, 7
    %v2073 = vsub.s32 3, %v2072
    %v2074 = vrot.slane %v2057, %v2073
    %v2079 = vmul.f32 %v1791, %v2062
    %v2080 = vmul.f32 %v1793, %v2066
    %v2081 = vmul.f32 %v1955, %v2070
    %v2082 = vmul.f32 %v1957, %v2074
    %v2083 = vadd.f32 %v2079, %v2080
    %v2084 = vadd.f32 %v2083, %v2081
    %v2085 = vadd.f32 %v2084, %v2082
    %2086 = vadd.xlane.f32.xlu0 %v2085
    %v2087 = vpop.xlane.xlu0 %2086
    %vm2088 = vcmask 7168
    %v2089 = vsel %vm2088, %v1991, %v2023
    %vm2090 = vcmask 15360
    %v2091 = vsel %vm2090, %v2089, %v2055
    %vm2092 = vcmask 23552
    %v2093 = vsel %vm2092, %v2091, %v2087
    %v2094 = vxor.u32 %v2093, 2147483648
    %v2095 = vmul.f32 %v2094, 1.442695
    %v2096 = vpow.pop %v2095
    %v2097 = vadd.f32 %v2096, 1.0
    %v2098 = vrcp.pop %v2097
    %v2099 = vmul.f32 1.0, %v2098
    %v2100 = vld [vmem:[%s4] sm:$0xf]
    %v2101 = vld [vmem:[%s5] sm:$0x1]
    %2103 = vset.pattern.permute.xlu0 0
    %2104 = vperm.xlu0 %2103, %v2099
    %v2105 = vpop.permute.xlu0 %2104
    %v2107 = vlaneseq
    %v2108 = vshrl.u32 %v2107, 7
    %v2109 = vsub.s32 0, %v2108
    %v2110 = vrot.slane %v2100, %v2109
    %v2111 = vmul.f32 %v2105, %v2110
    %v2113 = vlaneseq
    %v2114 = vshrl.u32 %v2113, 7
    %v2115 = vsub.s32 0, %v2114
    %v2116 = vrot.slane %v2101, %v2115
    %v2118 = vadd.f32 %v2116, %v2111
    %2119 = vset.pattern.permute.xlu0 1
    %2120 = vperm.xlu0 %2119, %v2099
    %v2121 = vpop.permute.xlu0 %2120
    %v2123 = vlaneseq
    %v2124 = vshrl.u32 %v2123, 7
    %v2125 = vsub.s32 1, %v2124
    %v2126 = vrot.slane %v2100, %v2125
    %v2127 = vmul.f32 %v2121, %v2126
    %v2128 = vadd.f32 %v2118, %v2127
    %2129 = vset.pattern.permute.xlu0 2
    %2130 = vperm.xlu0 %2129, %v2099
    %v2131 = vpop.permute.xlu0 %2130
    %v2133 = vlaneseq
    %v2134 = vshrl.u32 %v2133, 7
    %v2135 = vsub.s32 2, %v2134
    %v2136 = vrot.slane %v2100, %v2135
    %v2137 = vmul.f32 %v2131, %v2136
    %v2138 = vadd.f32 %v2128, %v2137
    %2139 = vset.pattern.permute.xlu0 3
    %2140 = vperm.xlu0 %2139, %v2099
    %v2141 = vpop.permute.xlu0 %2140
    %v2143 = vlaneseq
    %v2144 = vshrl.u32 %v2143, 7
    %v2145 = vsub.s32 3, %v2144
    %v2146 = vrot.slane %v2100, %v2145
    %v2147 = vmul.f32 %v2141, %v2146
    %v2148 = vadd.f32 %v2138, %v2147
    %v2149 = vmax.f32 %v2148, 0.0
    %v2150 = vld [vmem:[%s6] sm:$0x1]
    %v2151 = vlaneseq
    %v2152 = vshrl.u32 %v2151, 7
    %v2153 = vsub.s32 0, %v2152
    %v2154 = vrot.slane %v2150, %v2153
    %v2155 = vmul.f32 %v2149, %v2154
    %vm2156 = vcmask 130048
    %v2157 = vsel %vm2156, %v2155, 0.0
    %2158 = vadd.xlane.f32.xlu0 %v2157
    %v2159 = vpop.xlane.xlu0 %2158
    %v2160 = vld [vmem:[%s6 + $0x1] sm:$0x1]
    %v2161 = vlaneseq
    %v2162 = vshrl.u32 %v2161, 7
    %v2163 = vsub.s32 0, %v2162
    %v2164 = vrot.slane %v2160, %v2163
    %v2165 = vmul.f32 %v2149, %v2164
    %v2166 = vsel %vm2156, %v2165, 0.0
    %2167 = vadd.xlane.f32.xlu0 %v2166
    %v2168 = vpop.xlane.xlu0 %2167
    %v2169 = vld [vmem:[%s6 + $0x2] sm:$0x1]
    %v2170 = vlaneseq
    %v2171 = vshrl.u32 %v2170, 7
    %v2172 = vsub.s32 0, %v2171
    %v2173 = vrot.slane %v2169, %v2172
    %v2174 = vmul.f32 %v2149, %v2173
    %v2175 = vsel %vm2156, %v2174, 0.0
    %2176 = vadd.xlane.f32.xlu0 %v2175
    %v2177 = vpop.xlane.xlu0 %2176
    %v2178 = vld [vmem:[%s6 + $0x3] sm:$0x1]
    %v2179 = vlaneseq
    %v2180 = vshrl.u32 %v2179, 7
    %v2181 = vsub.s32 0, %v2180
    %v2182 = vrot.slane %v2178, %v2181
    %v2183 = vmul.f32 %v2149, %v2182
    %v2184 = vsel %vm2156, %v2183, 0.0
    %2185 = vadd.xlane.f32.xlu0 %v2184
    %v2186 = vpop.xlane.xlu0 %2185
    %v2187 = vsel %vm2088, %v2159, %v2168
    %v2188 = vsel %vm2090, %v2187, %v2177
    %v2189 = vsel %vm2092, %v2188, %v2186
    %v2190 = vld [vmem:[%s7] sm:$0x1]
    %v2192 = vlaneseq
    %v2193 = vshrl.u32 %v2192, 7
    %v2194 = vsub.s32 0, %v2193
    %v2195 = vrot.slane %v2190, %v2194
    %v2197 = vadd.f32 %v2189, %v2195
    %vm2198 = vcmask 31744
    %v2199 = vsel %vm2198, %v2197, -inf
    %2200 = vmax.xlane.f32.xlu0 %v2199
    %v2201 = vpop.xlane.xlu0 %2200
    %v2202 = vsub.f32 %v2197, %v2201
    %v2203 = vmul.f32 %v2202, 1.442695
    %v2204 = vpow.pop %v2203
    %v2205 = vsel %vm2198, %v2204, 0.0
    %2206 = vadd.xlane.f32.xlu0 %v2205
    %v2207 = vpop.xlane.xlu0 %2206
    %v2208 = vrcp.pop %v2207
    %v2209 = vmul.f32 %v2204, %v2208
    %v2210 = vlaneseq
    %v2211 = vand.u32 %v2210, 127
    %v2212 = vsel %vm2198, %v2209, -inf
    %2213 = vmax.xlane.f32.xlu0 %v2212
    %v2214 = vpop.xlane.xlu0 %2213
    %vm2215 = vcmp.eq.f32.partialorder %v2209, %v2214
    %v2216 = vsel %vm2215, %v2211, 4
    %v2217 = vsel %vm2198, %v2216, 2147483647
    %v2218 = vand.u32 %v2217, 65535
    %v2219 = vshra.s32 %v2217, 16
    %v2220 = vcvt.s32.f32 %v2218
    %v2221 = vcvt.s32.f32 %v2219
    %2222 = vmin.xlane.f32.xlu0 %v2221
    %v2223 = vpop.xlane.xlu0 %2222
    %vm2224 = vcmp.eq.f32.partialorder %v2221, %v2223
    %v2225 = vsel %vm2224, %v2220, inf
    %2226 = vmin.xlane.f32.xlu0 %v2225
    %v2227 = vpop.xlane.xlu0 %2226
    %v2228 = vcvt.f32.s32 %v2227
    %v2229 = vcvt.f32.s32 %v2223
    %v2230 = vshll.u32 %v2229, 16
    %v2231 = vadd.s32 %v2230, %v2228
    %vm2232 = vcmp.eq.s32.totalorder %v2211, %v2231
    %v2233 = vsel %vm2232, -inf, %v2209
    %v2234 = vsel %vm2198, %v2233, -inf
    %2235 = vmax.xlane.f32.xlu0 %v2234
    %v2236 = vpop.xlane.xlu0 %2235
    %vm2237 = vcmp.eq.f32.partialorder %v2233, %v2236
    %v2238 = vsel %vm2237, %v2211, 4
    %v2239 = vsel %vm2198, %v2238, 2147483647
    %v2240 = vand.u32 %v2239, 65535
    %v2241 = vshra.s32 %v2239, 16
    %v2242 = vcvt.s32.f32 %v2240
    %v2243 = vcvt.s32.f32 %v2241
    %2244 = vmin.xlane.f32.xlu0 %v2243
    %v2245 = vpop.xlane.xlu0 %2244
    %vm2246 = vcmp.eq.f32.partialorder %v2243, %v2245
    %v2247 = vsel %vm2246, %v2242, inf
    %2248 = vmin.xlane.f32.xlu0 %v2247
    %v2249 = vpop.xlane.xlu0 %2248
    %v2250 = vcvt.f32.s32 %v2249
    %v2251 = vcvt.f32.s32 %v2245
    %v2252 = vshll.u32 %v2251, 16
    %v2253 = vadd.s32 %v2252, %v2250
    %vm2254 = vcmp.eq.s32.totalorder %v2211, %v2253
    %vm2255 = vmor %vm2232, %vm2254
    %v2256 = vsel %vm2255, 1, 0
    %v2257 = vcvt.s32.f32 %v2256
    %v2258 = vmul.f32 %v2209, %v2257
    %v2259 = vsel %vm2198, %v2258, 0.0
    %2260 = vadd.xlane.f32.xlu0 %v2259
    %v2261 = vpop.xlane.xlu0 %2260
    %v2262 = vadd.f32 %v2261, 1e-08
    %v2263 = vrcp.pop %v2262
    %v2264 = vmul.f32 %v2258, %v2263
    %2266 = vset.pattern.permute.xlu0 0
    %2267 = vperm.xlu0 %2266, %v2264
    %v2268 = vpop.permute.xlu0 %2267
    %v2270 = vmul.f32 %v2268, %v1791
    %2271 = vset.pattern.permute.xlu0 1
    %2272 = vperm.xlu0 %2271, %v2264
    %v2273 = vpop.permute.xlu0 %2272
    %v2275 = vmul.f32 %v2273, %v1793
    %v2276 = vadd.f32 %v2270, %v2275
    %2277 = vset.pattern.permute.xlu0 2
    %2278 = vperm.xlu0 %2277, %v2264
    %v2279 = vpop.permute.xlu0 %2278
    %v2281 = vmul.f32 %v2279, %v1955
    %v2282 = vadd.f32 %v2276, %v2281
    %2283 = vset.pattern.permute.xlu0 3
    %2284 = vperm.xlu0 %2283, %v2264
    %v2285 = vpop.permute.xlu0 %2284
    %v2287 = vmul.f32 %v2285, %v1957
    %v2288 = vadd.f32 %v2282, %v2287
    %v2289 = vmul.f32 %v2264, %v2099
    %v2290 = vsel %vm2198, %v2289, 0.0
    %2291 = vadd.xlane.f32.xlu0 %v2290
    %v2292 = vpop.xlane.xlu0 %2291
    %v2293 = vsel %vm2088, %v2231, %v2253
    %v2294 = vcvt.s32.f32 %v2293
    %2295 = vrot.lane.b32.xlu0 %v2264, 80
    %v2296 = vpop.permute.xlu0 %2295
    %2298 = vrot.lane.b32.xlu0 %v2099, 84
    %v2299 = vpop.permute.xlu0 %2298
    %2302 = vrot.lane.b32.xlu0 %v2294, 89
    %v2303 = vpop.permute.xlu0 %2302
    %vm2305 = vcmask 654336
    %v2306 = vsel %vm2305, %v2288, %v2296
    %vm2307 = vcmask 687104
    %v2308 = vsel %vm2307, %v2306, %v2299
    %vm2309 = vcmask 719872
    %v2310 = vsel %vm2309, %v2308, %v2292
    %vm2311 = vcmask 728064
    %v2312 = vsel %vm2311, %v2310, %v2303
    %vm2313 = vcmask 744448
    %v2314 = vsel %vm2313, %v2312, 0.0
    %2315 = vst [vmem:[%s8] sm:$0xff] %v2314
    // Predicated region
    $region38: #{integrated_moe_forward.1} parent=1 // pred_check
      _
    $region39: #{integrated_moe_forward.1} parent=1 // pred_check_branch
      %2317 = sbr.rel (0) target = $region41
    $region40: #{integrated_moe_forward.1} parent=1 // pred_region
      _
    $region41: #{integrated_moe_forward.1} parent=1 // pred_fallthru
      _
    // Predicated region
    $region42: #{integrated_moe_forward.1} parent=1 // pred_check
      _
    $region43: #{integrated_moe_forward.1} parent=1 // pred_check_branch
      %2319 = sbr.rel (0) target = $region45
    $region44: #{integrated_moe_forward.1} parent=1 // pred_region
      _
    $region45: #{integrated_moe_forward.1} parent=1 // pred_fallthru
      _
    %2320 = vsyncpa [#allocation3], 1

</llo_original>
